<compile_context>
chip_gen: v7x
topology: tpu7x:2x2x1
jax: 0.10.0
libtpu: 0.0.40
codegen_flags: <defaults>
</compile_context>

<pallas_src>
import math
import functools

import jax
import jax.numpy as jnp
from jax.experimental import pallas as pl
from jax.experimental.pallas import tpu as pltpu

_BF16 = jnp.bfloat16
_LN_EPS = 1e-5

SRC_SCALES = [4, 2, 1]


# ----------------------------------------------------------------------------
# In-kernel helpers (traced inside Pallas kernels)
# ----------------------------------------------------------------------------
def _mm(a, w):
    """bf16-operand MXU matmul with f32 accumulation."""
    return jnp.dot(a.astype(_BF16), w.astype(_BF16),
                   preferred_element_type=jnp.float32)


def _mm_nt(a, b):
    """NT matmul (contract last axis of both operands), bf16 in / f32 acc."""
    return jax.lax.dot_general(a.astype(_BF16), b.astype(_BF16),
                               (((1,), (1,)), ((), ())),
                               preferred_element_type=jnp.float32)


def _ln(x, g, b):
    mu = jnp.mean(x, axis=-1, keepdims=True)
    xc = x - mu
    var = jnp.mean(xc * xc, axis=-1, keepdims=True)
    return (xc * jax.lax.rsqrt(var + _LN_EPS)) * g + b


def _attn_core(q, k, v, nheads, scale):
    """Head-batched softmax attention. q:(Nq,E) k,v:(Nk,E) f32 -> (Nq,E) f32."""
    nq, e = q.shape
    nk = k.shape[0]
    dh = e // nheads
    q3 = jnp.swapaxes(q.reshape(nq, nheads, dh), 0, 1).astype(_BF16)   # (h,Nq,dh)
    k3 = jnp.swapaxes(k.reshape(nk, nheads, dh), 0, 1).astype(_BF16)   # (h,Nk,dh)
    v3 = jnp.swapaxes(v.reshape(nk, nheads, dh), 0, 1).astype(_BF16)   # (h,Nk,dh)
    s = jnp.einsum('hqd,hkd->hqk', q3, k3,
                   preferred_element_type=jnp.float32) * scale          # (h,Nq,Nk)
    s = s - jnp.max(s, axis=-1, keepdims=True)
    p = jnp.exp(s)
    p = p * pl.reciprocal(jnp.sum(p, axis=-1, keepdims=True), approx=True)
    ctx = jnp.einsum('hqk,hkd->hqd', p.astype(_BF16), v3,
                     preferred_element_type=jnp.float32)                # (h,Nq,dh)
    return jnp.swapaxes(ctx, 0, 1).reshape(nq, e)                       # (Nq,E)


def _pred_heads_body(dec, vf, wmc, bmc, m1w, m1b, m2w, m2b):
    """decoder_norm'd queries -> (class logits, (Q,P) mask logits).

    wmc is packed [mask_embed_layer0 | class_embed] so the MLP slice starts at
    lane 0 and only the store-only class slice sits at a lane offset."""
    e = dec.shape[-1]
    y = _mm(dec, wmc) + bmc                               # (Q, E + n_cls)
    cls = y[:, e:]                                        # (Q, n_cls)
    h = jnp.maximum(y[:, :e], 0.0)                        # mask MLP layer 0 + ReLU
    h = jnp.maximum(_mm(h, m1w) + m1b, 0.0)               # layer 1 + ReLU
    me = _mm(h, m2w) + m2b                                # layer 2
    mask = _mm_nt(me, vf)                                 # (Q, P) lane-dense
    return cls, mask


# ----------------------------------------------------------------------------
# Pallas kernels
# ----------------------------------------------------------------------------
def _init_heads_kernel(msrc_ref, pos_ref, mfw_ref, mfb_ref, out0_ref,
                       dng_ref, dnb_ref, wmc_ref, bmc_ref,
                       m1w_ref, m1b_ref, m2w_ref, m2b_ref,
                       vf_ref, cls_ref, mask_ref):
    """voxel_feat = mask_feat_proj(x) + pos ; pred_heads(initial queries)."""
    vf = _mm(msrc_ref[0], mfw_ref[...]) + mfb_ref[...] + pos_ref[0].astype(jnp.float32)
    vf_bf = vf.astype(_BF16)
    vf_ref[0] = vf_bf
    dec = _ln(out0_ref[0].astype(jnp.float32), dng_ref[...], dnb_ref[...])
    cls, mask = _pred_heads_body(dec, vf_bf, wmc_ref[...], bmc_ref[...],
                                 m1w_ref[...], m1b_ref[...], m2w_ref[...], m2b_ref[...])
    cls_ref[0] = cls.astype(cls_ref.dtype)
    mask_ref[0] = mask.astype(mask_ref.dtype)


def _decoder_layer_kernel(out_ref, qpos_ref, src_ref, pos_ref, vf_ref,
                          ipw_ref, ipb_ref,
                          cwq_ref, cbq_ref, cwk_ref, cbk_ref, cwv_ref, cbv_ref,
                          cwo_ref, cbo_ref, cng_ref, cnb_ref,
                          swqk_ref, sbqk_ref, swv_ref, sbv_ref, swo_ref, sbo_ref,
                          sng_ref, snb_ref,
                          fw1_ref, fb1_ref, fw2_ref, fb2_ref, fng_ref, fnb_ref,
                          dng_ref, dnb_ref, wmc_ref, bmc_ref,
                          m1w_ref, m1b_ref, m2w_ref, m2b_ref,
                          newout_ref, cls_ref, mask_ref,
                          *, nheads, scale):
    """One fused decoder layer: input_proj + cross-attn + self-attn + FFN
    (each with residual + post-LayerNorm) + this layer's pred_heads."""
    tgt = out_ref[0].astype(jnp.float32)                       # (Nq, E)
    qpos = qpos_ref[0].astype(jnp.float32)                     # (Nq, E)
    mem = _mm(src_ref[0], ipw_ref[...]) + ipb_ref[...]         # input proj (Pi, E)
    pos = pos_ref[0].astype(jnp.float32)                       # (Pi, E)
    e = tgt.shape[-1]

    # --- cross attention (q = tgt + qpos, k = mem + pos, v = mem) ---
    q = _mm(tgt + qpos, cwq_ref[...]) + cbq_ref[...]
    k = _mm(mem + pos, cwk_ref[...]) + cbk_ref[...]
    v = _mm(mem, cwv_ref[...]) + cbv_ref[...]
    y = _mm(_attn_core(q, k, v, nheads, scale), cwo_ref[...]) + cbo_ref[...]
    tgt = _ln(tgt + y, cng_ref[...], cnb_ref[...])

    # --- self attention (q_in == k_in -> packed wq|wk single matmul) ---
    qk = _mm(tgt + qpos, swqk_ref[...]) + sbqk_ref[...]        # (Nq, 2E)
    v = _mm(tgt, swv_ref[...]) + sbv_ref[...]
    y = _mm(_attn_core(qk[:, :e], qk[:, e:], v, nheads, scale),
            swo_ref[...]) + sbo_ref[...]
    tgt = _ln(tgt + y, sng_ref[...], snb_ref[...])

    # --- FFN ---
    h = jnp.maximum(_mm(tgt, fw1_ref[...]) + fb1_ref[...], 0.0)
    y = _mm(h, fw2_ref[...]) + fb2_ref[...]
    tgt = _ln(tgt + y, fng_ref[...], fnb_ref[...])
    newout_ref[0] = tgt.astype(newout_ref.dtype)               # bf16 residual stream

    # --- pred heads ---
    dec = _ln(tgt, dng_ref[...], dnb_ref[...])
    cls, mask = _pred_heads_body(dec, vf_ref[0], wmc_ref[...], bmc_ref[...],
                                 m1w_ref[...], m1b_ref[...], m2w_ref[...], m2b_ref[...])
    cls_ref[0] = cls.astype(cls_ref.dtype)
    mask_ref[0] = mask.astype(mask_ref.dtype)


# ----------------------------------------------------------------------------
# Pallas wrappers (grid=(B,), "parallel" -> v7x dual TensorCores)
# ----------------------------------------------------------------------------
def _cp():
    return pltpu.CompilerParams(dimension_semantics=("parallel",))


def _bspec(n, e):
    return pl.BlockSpec((1, n, e), lambda i: (i, 0, 0))


def _wspec(r, c):
    return pl.BlockSpec((r, c), lambda i: (0, 0))


def pallas_init_heads(mask_src, pos_last, mfw, mfb, output0, hp):
    """Fused mask_feat_proj (+ pos add) and the first pred_heads call."""
    B, P, Cm = mask_src.shape
    E = mfw.shape[1]
    Q = output0.shape[1]
    Ncm = hp["wmc"].shape[1]
    n_cls = Ncm - E
    in_specs = [
        _bspec(P, Cm), _bspec(P, E),
        _wspec(Cm, E), _wspec(1, E),
        _bspec(Q, E),
        _wspec(1, E), _wspec(1, E),
        _wspec(E, Ncm), _wspec(1, Ncm),
        _wspec(E, E), _wspec(1, E), _wspec(E, E), _wspec(1, E),
    ]
    out_specs = (_bspec(P, E), _bspec(Q, n_cls), _bspec(Q, P))
    out_shape = (jax.ShapeDtypeStruct((B, P, E), _BF16),
                 jax.ShapeDtypeStruct((B, Q, n_cls), jnp.float32),
                 jax.ShapeDtypeStruct((B, Q, P), jnp.float32))
    return pl.pallas_call(
        _init_heads_kernel,
        out_shape=out_shape,
        grid=(B,),
        in_specs=in_specs,
        out_specs=out_specs,
        compiler_params=_cp(),
    )(mask_src, pos_last, mfw, mfb, output0,
      hp["dng"], hp["dnb"], hp["wmc"], hp["bmc"],
      hp["m1w"], hp["m1b"], hp["m2w"], hp["m2b"])


def pallas_decoder_layer(output, query_embed, src, pos_i, voxel_feat, lp, hp, nheads):
    """One fused decoder layer + pred_heads. Returns (new_output, cls, mask_qp)."""
    B, Nq, E = output.shape
    Pi, Cin = src.shape[1], src.shape[2]
    P = voxel_feat.shape[1]
    F = lp["fw1"].shape[1]
    Ncm = hp["wmc"].shape[1]
    n_cls = Ncm - E
    dh = E // nheads
    in_specs = [
        _bspec(Nq, E), _bspec(Nq, E), _bspec(Pi, Cin), _bspec(Pi, E), _bspec(P, E),
        # input proj
        _wspec(Cin, E), _wspec(1, E),
        # cross attention
        _wspec(E, E), _wspec(1, E), _wspec(E, E), _wspec(1, E),
        _wspec(E, E), _wspec(1, E), _wspec(E, E), _wspec(1, E),
        _wspec(1, E), _wspec(1, E),
        # self attention (packed q|k)
        _wspec(E, 2 * E), _wspec(1, 2 * E), _wspec(E, E), _wspec(1, E),
        _wspec(E, E), _wspec(1, E), _wspec(1, E), _wspec(1, E),
        # ffn
        _wspec(E, F), _wspec(1, F), _wspec(F, E), _wspec(1, E),
        _wspec(1, E), _wspec(1, E),
        # pred heads
        _wspec(1, E), _wspec(1, E), _wspec(E, Ncm), _wspec(1, Ncm),
        _wspec(E, E), _wspec(1, E), _wspec(E, E), _wspec(1, E),
    ]
    out_specs = (_bspec(Nq, E), _bspec(Nq, n_cls), _bspec(Nq, P))
    out_shape = (jax.ShapeDtypeStruct((B, Nq, E), _BF16),
                 jax.ShapeDtypeStruct((B, Nq, n_cls), jnp.float32),
                 jax.ShapeDtypeStruct((B, Nq, P), jnp.float32))
    kernel = functools.partial(_decoder_layer_kernel, nheads=nheads,
                               scale=1.0 / math.sqrt(dh))
    return pl.pallas_call(
        kernel,
        out_shape=out_shape,
        grid=(B,),
        in_specs=in_specs,
        out_specs=out_specs,
        compiler_params=_cp(),
    )(output, query_embed, src, pos_i, voxel_feat,
      lp["ipw"], lp["ipb"],
      lp["cwq"], lp["cbq"], lp["cwk"], lp["cbk"], lp["cwv"], lp["cbv"],
      lp["cwo"], lp["cbo"], lp["cng"], lp["cnb"],
      lp["swqk"], lp["sbqk"], lp["swv"], lp["sbv"], lp["swo"], lp["sbo"],
      lp["sng"], lp["snb"],
      lp["fw1"], lp["fb1"], lp["fw2"], lp["fb2"], lp["fng"], lp["fnb"],
      hp["dng"], hp["dnb"], hp["wmc"], hp["bmc"],
      hp["m1w"], hp["m1b"], hp["m2w"], hp["m2b"])


# ----------------------------------------------------------------------------
# Glue: sine positional encoding (PositionEmbeddingSineSparse, normalize=True)
# ----------------------------------------------------------------------------
def pe_sine_3d(coords, num_pos_feats, temperature=10000.0):
    eps = 1e-6
    scale = 2.0 * math.pi
    c = coords.astype(jnp.float32)
    c = c / (jnp.max(c, axis=0, keepdims=True) + eps) * scale
    dim_t = temperature ** (2.0 * (jnp.arange(num_pos_feats) // 2) / num_pos_feats)
    pos = c[:, :, None] / dim_t                                   # (N, 3, F)
    pe = jnp.stack([jnp.sin(pos[:, :, 0::2]), jnp.cos(pos[:, :, 1::2])], axis=-1)
    pe = pe.reshape(c.shape[0], 3, num_pos_feats)
    return pe.reshape(c.shape[0], 3 * num_pos_feats)


# ----------------------------------------------------------------------------
# Parameters
# ----------------------------------------------------------------------------
def _lin_init(key, fan_in, fan_out):
    return {"w": 0.02 * jax.random.normal(key, (fan_in, fan_out), jnp.float32),
            "b": jnp.zeros((fan_out,), jnp.float32)}


def _norm_init(dim):
    return {"g": jnp.ones((dim,), jnp.float32), "b": jnp.zeros((dim,), jnp.float32)}


def _mha_init(key, dim):
    ks = jax.random.split(key, 4)
    return {"wq": 0.02 * jax.random.normal(ks[0], (dim, dim), jnp.float32), "bq": jnp.zeros((dim,)),
            "wk": 0.02 * jax.random.normal(ks[1], (dim, dim), jnp.float32), "bk": jnp.zeros((dim,)),
            "wv": 0.02 * jax.random.normal(ks[2], (dim, dim), jnp.float32), "bv": jnp.zeros((dim,)),
            "wo": 0.02 * jax.random.normal(ks[3], (dim, dim), jnp.float32), "bo": jnp.zeros((dim,))}


def init_params(key, in_channels, hidden, num_classes, num_queries, n_infers,
                dim_feedforward, mask_dim):
    keys = jax.random.split(key, 64)
    it = iter(keys)
    num_layers = len(SRC_SCALES)
    params = {
        "query_feat": 0.02 * jax.random.normal(next(it), (num_queries * n_infers, hidden), jnp.float32),
        "query_embed": 0.02 * jax.random.normal(next(it), (num_queries * n_infers, hidden), jnp.float32),
        "pts_embed": 0.02 * jax.random.normal(next(it), (num_queries * n_infers, 2), jnp.float32),
        "decoder_norm": _norm_init(hidden),
        "class_embed": _lin_init(next(it), hidden, num_classes + 1),
        "mask_embed": [_lin_init(next(it), hidden, hidden) for _ in range(3)],
        "mask_feat_proj": _lin_init(next(it), mask_dim, hidden),
        "input_projs": [_lin_init(next(it), in_channels[i], hidden) for i in range(num_layers)],
        "image_proj": [_lin_init(next(it), in_channels[0], hidden) for _ in range(num_layers)],
        "cross": [{"attn": _mha_init(next(it), hidden), "norm": _norm_init(hidden)}
                  for _ in range(num_layers)],
        "self": [{"attn": _mha_init(next(it), hidden), "norm": _norm_init(hidden)}
                 for _ in range(num_layers)],
        "ffn": [{"lin1": _lin_init(next(it), hidden, dim_feedforward),
                 "lin2": _lin_init(next(it), dim_feedforward, hidden),
                 "norm": _norm_init(hidden)} for _ in range(num_layers)],
    }
    return params


def _prep_head_params(params, E):
    """Pre-cast / pack the pred_heads params once ([mask_embed0 | class_embed])."""
    n_cls = params["class_embed"]["w"].shape[1]
    wmc = jnp.concatenate([params["mask_embed"][0]["w"],
                           params["class_embed"]["w"]], axis=1).astype(_BF16)
    bmc = jnp.concatenate([params["mask_embed"][0]["b"],
                           params["class_embed"]["b"]]).reshape(1, E + n_cls)
    return dict(
        dng=params["decoder_norm"]["g"].reshape(1, E),
        dnb=params["decoder_norm"]["b"].reshape(1, E),
        wmc=wmc, bmc=bmc,
        m1w=params["mask_embed"][1]["w"].astype(_BF16),
        m1b=params["mask_embed"][1]["b"].reshape(1, E),
        m2w=params["mask_embed"][2]["w"].astype(_BF16),
        m2b=params["mask_embed"][2]["b"].reshape(1, E),
    )


def _prep_layer_params(params, i, E):
    """Pre-cast matmul weights to bf16, reshape biases, pack self-attn wq|wk."""
    ca = params["cross"][i]["attn"]; cn = params["cross"][i]["norm"]
    sa = params["self"][i]["attn"]; sn = params["self"][i]["norm"]
    fp = params["ffn"][i]
    F = fp["lin1"]["w"].shape[1]
    return dict(
        ipw=params["input_projs"][i]["w"].astype(_BF16),
        ipb=params["input_projs"][i]["b"].reshape(1, E),
        cwq=ca["wq"].astype(_BF16), cbq=ca["bq"].reshape(1, E),
        cwk=ca["wk"].astype(_BF16), cbk=ca["bk"].reshape(1, E),
        cwv=ca["wv"].astype(_BF16), cbv=ca["bv"].reshape(1, E),
        cwo=ca["wo"].astype(_BF16), cbo=ca["bo"].reshape(1, E),
        cng=cn["g"].reshape(1, E), cnb=cn["b"].reshape(1, E),
        swqk=jnp.concatenate([sa["wq"], sa["wk"]], axis=1).astype(_BF16),
        sbqk=jnp.concatenate([sa["bq"], sa["bk"]]).reshape(1, 2 * E),
        swv=sa["wv"].astype(_BF16), sbv=sa["bv"].reshape(1, E),
        swo=sa["wo"].astype(_BF16), sbo=sa["bo"].reshape(1, E),
        sng=sn["g"].reshape(1, E), snb=sn["b"].reshape(1, E),
        fw1=fp["lin1"]["w"].astype(_BF16), fb1=fp["lin1"]["b"].reshape(1, F),
        fw2=fp["lin2"]["w"].astype(_BF16), fb2=fp["lin2"]["b"].reshape(1, E),
        fng=fp["norm"]["g"].reshape(1, E), fnb=fp["norm"]["b"].reshape(1, E),
    )


# ----------------------------------------------------------------------------
# Model forward (transformer decoder stack) — 4 pallas_calls total
# ----------------------------------------------------------------------------
def transformer_predictor_v2_forward(params, xs, sem_logits, min_Cs, max_Cs, keep_pad,
                                     query_intermediate, multi_scale_image_features,
                                     scene_size_at_scales, *, hidden, nheads, n_infers):
    sem_logits_F, _sem_logits_C = sem_logits
    bs = sem_logits_F.shape[0]
    assert n_infers == bs, "batch size should be equal to number of inference"
    n_steps = hidden // 3
    E = hidden

    output = params["query_feat"].reshape(bs, -1, hidden).astype(_BF16)
    query_embed = params["query_embed"].reshape(bs, -1, hidden).astype(_BF16)

    # TODO(synk): pred_pts / ref_2d_multi_scale / image_proj only feed the
    # SymphoniesLayer (omitted passthrough below), so their dead computation is skipped.

    hp = _prep_head_params(params, E)
    mfw = params["mask_feat_proj"]["w"].astype(_BF16)
    mfb = params["mask_feat_proj"]["b"].reshape(1, E)

    srcs, pos = [], []
    for i, scale in enumerate(SRC_SCALES):
        batch_F, batch_C = xs[scale]
        srcs.append(batch_F)
        pe = pe_sine_3d(batch_C.reshape(-1, 4)[:, 1:], n_steps).reshape(bs, -1, hidden)
        pos.append(pe)

    # voxel_feat = mask_feat_proj(xs[1].F) + pos[-1], fused with the first pred_heads.
    voxel_feat, cls0, mask0 = pallas_init_heads(xs[1][0], pos[-1], mfw, mfb, output, hp)

    predictions_class = [cls0]
    predictions_mask = [jnp.transpose(mask0, (0, 2, 1))]   # kernel emits (B,Q,P) -> (B,P,Q)

    for i in range(len(SRC_SCALES)):
        # TODO(synk): SymphoniesLayer (deformable cross-attention + sparse->dense
        # coordinate-dict scatter) has no clean Pallas equivalent; src / output pass
        # through unchanged.
        # TODO(synk): compute_attn_mask relies on MinkowskiMaxPooling / ME.SparseTensor
        # sparse downscaling; cross-attention runs unmasked.
        lp = _prep_layer_params(params, i, E)
        output, cls_i, mask_i = pallas_decoder_layer(
            output, query_embed, srcs[i], pos[i], voxel_feat, lp, hp, nheads)
        predictions_class.append(cls_i)
        predictions_mask.append(jnp.transpose(mask_i, (0, 2, 1)))

    # TODO(synk): keep_pad boolean gather + ME.SparseTensor wrapping produce
    # data-dependent shapes; full (unfiltered) dense arrays are returned instead.
    panop_predictions = []
    for i in range(bs):
        out = {
            "query_logits": predictions_class[-1][i][None],
            "voxel_logits": predictions_mask[-1][i],
            "aux_outputs": [{"query_logits": a[i][None], "voxel_logits": b[i]}
                            for a, b in zip(predictions_class[:-1], predictions_mask[:-1])],
        }
        panop_predictions.append(out)
    return panop_predictions


# ----------------------------------------------------------------------------
# Main
# ----------------------------------------------------------------------------
if __name__ == "__main__":
    # Small, module-consistent shapes.
    bs = n_infers = 2
    hidden = 48            # divisible by 3 (N_steps = 16) and by nheads
    nheads = 4
    num_queries = 8
    num_classes = 5
    dim_feedforward = 64
    mask_dim = 24
    in_channels = [16, 16, mask_dim]        # in_channels[2] must equal mask_dim
    n_voxels = {4: 32, 2: 64, 1: 128}
    img_hw = 8

    root = jax.random.PRNGKey(0)
    k_param, k_data = jax.random.split(root)
    params = init_params(k_param, in_channels, hidden, num_classes, num_queries,
                         n_infers, dim_feedforward, mask_dim)

    dk = jax.random.split(k_data, 16)
    xs = {}
    for idx, scale in enumerate(SRC_SCALES):
        P = n_voxels[scale]
        feat = jax.random.normal(dk[idx], (bs, P, in_channels[idx]), jnp.float32)
        coord_xyz = jax.random.randint(dk[idx + 4], (bs, P, 3), 0, 32).astype(jnp.float32)
        batch_idx = jnp.broadcast_to(jnp.arange(bs, dtype=jnp.float32)[:, None, None], (bs, P, 1))
        coord = jnp.concatenate([batch_idx, coord_xyz], axis=-1)      # (bs, P, 4)
        xs[scale] = (feat, coord)

    sem_logits_F = jax.random.normal(dk[8], (bs, n_voxels[1], num_classes + 1), jnp.float32)
    sem_logits_C = xs[1][1]
    sem_logits = (sem_logits_F, sem_logits_C)
    min_Cs = jnp.zeros((bs, 3), jnp.float32)
    max_Cs = jnp.full((bs, 3), 31.0, jnp.float32)
    keep_pad = jnp.ones((bs, n_voxels[1]), jnp.bool_)
    query_intermediate = None
    multi_scale_image_features = [
        jax.random.normal(dk[9 + i], (bs, in_channels[0], img_hw, img_hw), jnp.float32)
        for i in range(len(SRC_SCALES))
    ]
    scene_size_at_scales = {s: jnp.array([32 // s, 32 // s, 8 // min(s, 8)], jnp.int32)
                            for s in SRC_SCALES}

    panop = transformer_predictor_v2_forward(
        params, xs, sem_logits, min_Cs, max_Cs, keep_pad, query_intermediate,
        multi_scale_image_features, scene_size_at_scales,
        hidden=hidden, nheads=nheads, n_infers=n_infers)

    jax.block_until_ready(panop)
    ql = panop[0]["query_logits"]
    vl = panop[0]["voxel_logits"]
    assert ql.shape == (1, num_queries, num_classes + 1), ql.shape
    assert vl.shape == (n_voxels[1], num_queries), vl.shape
    assert len(panop[0]["aux_outputs"]) == len(SRC_SCALES)
    assert bool(jnp.all(jnp.isfinite(ql))) and bool(jnp.all(jnp.isfinite(vl)))
    print("KERNEL_OK")
</pallas_src>

<mosaic_0001>
module attributes {stable_mosaic.version = 11 : i64} {
  func.func @_init_heads_kernel(%arg0: i32, %arg1: memref<1x128x24xf32, #tpu.memory_space<vmem>>, %arg2: memref<1x128x48xf32, #tpu.memory_space<vmem>>, %arg3: memref<24x48xbf16, #tpu.memory_space<vmem>>, %arg4: memref<1x48xf32, #tpu.memory_space<vmem>>, %arg5: memref<1x8x48xbf16, #tpu.memory_space<vmem>>, %arg6: memref<1x48xf32, #tpu.memory_space<vmem>>, %arg7: memref<1x48xf32, #tpu.memory_space<vmem>>, %arg8: memref<48x54xbf16, #tpu.memory_space<vmem>>, %arg9: memref<1x54xf32, #tpu.memory_space<vmem>>, %arg10: memref<48x48xbf16, #tpu.memory_space<vmem>>, %arg11: memref<1x48xf32, #tpu.memory_space<vmem>>, %arg12: memref<48x48xbf16, #tpu.memory_space<vmem>>, %arg13: memref<1x48xf32, #tpu.memory_space<vmem>>, %arg14: memref<1x128x48xbf16, #tpu.memory_space<vmem>>, %arg15: memref<1x8x6xf32, #tpu.memory_space<vmem>>, %arg16: memref<1x8x128xf32, #tpu.memory_space<vmem>>) attributes {dimension_semantics = [#tpu.dimension_semantics<parallel>], iteration_bounds = array<i64: 2>, scalar_prefetch = 0 : i64, scratch_operands = 0 : i64, tpu.core_type = #tpu.core_type<tc>, window_params = [{transform_indices = @transform_0, window_bounds = array<i64: 1, 128, 24>}, {transform_indices = @transform_1, window_bounds = array<i64: 1, 128, 48>}, {pipeline_mode = #tpu.pipeline_mode<synchronous>, transform_indices = @transform_2, window_bounds = array<i64: 24, 48>}, {pipeline_mode = #tpu.pipeline_mode<synchronous>, transform_indices = @transform_3, window_bounds = array<i64: 1, 48>}, {transform_indices = @transform_4, window_bounds = array<i64: 1, 8, 48>}, {pipeline_mode = #tpu.pipeline_mode<synchronous>, transform_indices = @transform_5, window_bounds = array<i64: 1, 48>}, {pipeline_mode = #tpu.pipeline_mode<synchronous>, transform_indices = @transform_6, window_bounds = array<i64: 1, 48>}, {pipeline_mode = #tpu.pipeline_mode<synchronous>, transform_indices = @transform_7, window_bounds = array<i64: 48, 54>}, {pipeline_mode = #tpu.pipeline_mode<synchronous>, transform_indices = @transform_8, window_bounds = array<i64: 1, 54>}, {pipeline_mode = #tpu.pipeline_mode<synchronous>, transform_indices = @transform_9, window_bounds = array<i64: 48, 48>}, {pipeline_mode = #tpu.pipeline_mode<synchronous>, transform_indices = @transform_10, window_bounds = array<i64: 1, 48>}, {pipeline_mode = #tpu.pipeline_mode<synchronous>, transform_indices = @transform_11, window_bounds = array<i64: 48, 48>}, {pipeline_mode = #tpu.pipeline_mode<synchronous>, transform_indices = @transform_12, window_bounds = array<i64: 1, 48>}, {transform_indices = @transform_13, window_bounds = array<i64: 1, 128, 48>}, {transform_indices = @transform_14, window_bounds = array<i64: 1, 8, 6>}, {transform_indices = @transform_15, window_bounds = array<i64: 1, 8, 128>}]} {
    %c0 = arith.constant 0 : index
    %c0_0 = arith.constant 0 : index
    %c0_1 = arith.constant 0 : index
    %0 = vector.load %arg1[%c0, %c0_0, %c0_1] : memref<1x128x24xf32, #tpu.memory_space<vmem>>, vector<1x128x24xf32>
    %1 = vector.shape_cast %0 : vector<1x128x24xf32> to vector<128x24xf32>
    %c0_2 = arith.constant 0 : index
    %c0_3 = arith.constant 0 : index
    %2 = vector.load %arg3[%c0_2, %c0_3] : memref<24x48xbf16, #tpu.memory_space<vmem>>, vector<24x48xbf16>
    %3 = arith.truncf %1 : vector<128x24xf32> to vector<128x24xbf16>
    %cst = arith.constant dense<0.000000e+00> : vector<128x48xf32>
    %4 = tpu.matmul %3, %2, %cst {dimension_numbers = #tpu.dot_dimension_numbers<[1], [0], [0], [1], [0, 0, 1, 1], [], []>} : vector<128x24xbf16>, vector<24x48xbf16>, vector<128x48xf32> -> vector<128x48xf32>
    %c0_4 = arith.constant 0 : index
    %c0_5 = arith.constant 0 : index
    %5 = vector.load %arg4[%c0_4, %c0_5] : memref<1x48xf32, #tpu.memory_space<vmem>>, vector<1x48xf32>
    %6 = vector.broadcast %5 : vector<1x48xf32> to vector<128x48xf32>
    %7 = arith.addf %4, %6 : vector<128x48xf32>
    %c0_6 = arith.constant 0 : index
    %c0_7 = arith.constant 0 : index
    %c0_8 = arith.constant 0 : index
    %8 = vector.load %arg2[%c0_6, %c0_7, %c0_8] : memref<1x128x48xf32, #tpu.memory_space<vmem>>, vector<1x128x48xf32>
    %9 = vector.shape_cast %8 : vector<1x128x48xf32> to vector<128x48xf32>
    %10 = arith.addf %7, %9 : vector<128x48xf32>
    %11 = arith.truncf %10 : vector<128x48xf32> to vector<128x48xbf16>
    %c0_9 = arith.constant 0 : index
    %c0_10 = arith.constant 0 : index
    %c0_11 = arith.constant 0 : index
    %12 = vector.load %arg14[%c0_9, %c0_10, %c0_11] : memref<1x128x48xbf16, #tpu.memory_space<vmem>>, vector<1x128x48xbf16>
    %13 = vector.shape_cast %12 : vector<1x128x48xbf16> to vector<128x48xbf16>
    %14 = vector.shape_cast %11 : vector<128x48xbf16> to vector<1x128x48xbf16>
    tpu.vector_store %arg14[%c0_9, %c0_10, %c0_11], %14 {strides = array<i32>} : memref<1x128x48xbf16, #tpu.memory_space<vmem>>, vector<1x128x48xbf16>,
    %c0_12 = arith.constant 0 : index
    %c0_13 = arith.constant 0 : index
    %c0_14 = arith.constant 0 : index
    %15 = vector.load %arg5[%c0_12, %c0_13, %c0_14] : memref<1x8x48xbf16, #tpu.memory_space<vmem>>, vector<1x8x48xbf16>
    %16 = vector.shape_cast %15 : vector<1x8x48xbf16> to vector<8x48xbf16>
    %17 = arith.extf %16 : vector<8x48xbf16> to vector<8x48xf32>
    %c0_15 = arith.constant 0 : index
    %c0_16 = arith.constant 0 : index
    %18 = vector.load %arg6[%c0_15, %c0_16] : memref<1x48xf32, #tpu.memory_space<vmem>>, vector<1x48xf32>
    %c0_17 = arith.constant 0 : index
    %c0_18 = arith.constant 0 : index
    %19 = vector.load %arg7[%c0_17, %c0_18] : memref<1x48xf32, #tpu.memory_space<vmem>>, vector<1x48xf32>
    %cst_19 = arith.constant dense<0.000000e+00> : vector<8xf32>
    %20 = vector.multi_reduction <add>, %17, %cst_19 [1] : vector<8x48xf32> to vector<8xf32>
    %21 = vector.shape_cast %20 : vector<8xf32> to vector<8x1xf32>
    %cst_20 = arith.constant 4.800000e+01 : f32
    %22 = vector.broadcast %cst_20 : f32 to vector<8x1xf32>
    %23 = arith.divf %21, %22 : vector<8x1xf32>
    %24 = vector.broadcast %23 : vector<8x1xf32> to vector<8x48xf32>
    %25 = arith.subf %17, %24 : vector<8x48xf32>
    %26 = arith.mulf %25, %25 : vector<8x48xf32>
    %cst_21 = arith.constant dense<0.000000e+00> : vector<8xf32>
    %27 = vector.multi_reduction <add>, %26, %cst_21 [1] : vector<8x48xf32> to vector<8xf32>
    %28 = vector.shape_cast %27 : vector<8xf32> to vector<8x1xf32>
    %cst_22 = arith.constant 4.800000e+01 : f32
    %29 = vector.broadcast %cst_22 : f32 to vector<8x1xf32>
    %30 = arith.divf %28, %29 : vector<8x1xf32>
    %cst_23 = arith.constant 9.99999974E-6 : f32
    %31 = vector.broadcast %cst_23 : f32 to vector<8x1xf32>
    %32 = arith.addf %30, %31 : vector<8x1xf32>
    %33 = math.rsqrt %32 : vector<8x1xf32>
    %34 = vector.broadcast %33 : vector<8x1xf32> to vector<8x48xf32>
    %35 = arith.mulf %25, %34 : vector<8x48xf32>
    %36 = vector.broadcast %18 : vector<1x48xf32> to vector<8x48xf32>
    %37 = arith.mulf %35, %36 : vector<8x48xf32>
    %38 = vector.broadcast %19 : vector<1x48xf32> to vector<8x48xf32>
    %39 = arith.addf %37, %38 : vector<8x48xf32>
    %c0_24 = arith.constant 0 : index
    %c0_25 = arith.constant 0 : index
    %40 = vector.load %arg8[%c0_24, %c0_25] : memref<48x54xbf16, #tpu.memory_space<vmem>>, vector<48x54xbf16>
    %c0_26 = arith.constant 0 : index
    %c0_27 = arith.constant 0 : index
    %41 = vector.load %arg9[%c0_26, %c0_27] : memref<1x54xf32, #tpu.memory_space<vmem>>, vector<1x54xf32>
    %c0_28 = arith.constant 0 : index
    %c0_29 = arith.constant 0 : index
    %42 = vector.load %arg10[%c0_28, %c0_29] : memref<48x48xbf16, #tpu.memory_space<vmem>>, vector<48x48xbf16>
    %c0_30 = arith.constant 0 : index
    %c0_31 = arith.constant 0 : index
    %43 = vector.load %arg11[%c0_30, %c0_31] : memref<1x48xf32, #tpu.memory_space<vmem>>, vector<1x48xf32>
    %c0_32 = arith.constant 0 : index
    %c0_33 = arith.constant 0 : index
    %44 = vector.load %arg12[%c0_32, %c0_33] : memref<48x48xbf16, #tpu.memory_space<vmem>>, vector<48x48xbf16>
    %c0_34 = arith.constant 0 : index
    %c0_35 = arith.constant 0 : index
    %45 = vector.load %arg13[%c0_34, %c0_35] : memref<1x48xf32, #tpu.memory_space<vmem>>, vector<1x48xf32>
    %46 = arith.truncf %39 : vector<8x48xf32> to vector<8x48xbf16>
    %cst_36 = arith.constant dense<0.000000e+00> : vector<8x54xf32>
    %47 = tpu.matmul %46, %40, %cst_36 {dimension_numbers = #tpu.dot_dimension_numbers<[1], [0], [0], [1], [0, 0, 1, 1], [], []>} : vector<8x48xbf16>, vector<48x54xbf16>, vector<8x54xf32> -> vector<8x54xf32>
    %48 = vector.broadcast %41 : vector<1x54xf32> to vector<8x54xf32>
    %49 = arith.addf %47, %48 : vector<8x54xf32>
    %50 = vector.extract_strided_slice %49 {offsets = [0, 48], sizes = [8, 6], strides = [1, 1]} : vector<8x54xf32> to vector<8x6xf32>
    %51 = vector.extract_strided_slice %49 {offsets = [0, 0], sizes = [8, 48], strides = [1, 1]} : vector<8x54xf32> to vector<8x48xf32>
    %cst_37 = arith.constant 0.000000e+00 : f32
    %52 = vector.broadcast %cst_37 : f32 to vector<8x48xf32>
    %53 = arith.maximumf %51, %52 : vector<8x48xf32>
    %54 = arith.truncf %53 : vector<8x48xf32> to vector<8x48xbf16>
    %cst_38 = arith.constant dense<0.000000e+00> : vector<8x48xf32>
    %55 = tpu.matmul %54, %42, %cst_38 {dimension_numbers = #tpu.dot_dimension_numbers<[1], [0], [0], [1], [0, 0, 1, 1], [], []>} : vector<8x48xbf16>, vector<48x48xbf16>, vector<8x48xf32> -> vector<8x48xf32>
    %56 = vector.broadcast %43 : vector<1x48xf32> to vector<8x48xf32>
    %57 = arith.addf %55, %56 : vector<8x48xf32>
    %cst_39 = arith.constant 0.000000e+00 : f32
    %58 = vector.broadcast %cst_39 : f32 to vector<8x48xf32>
    %59 = arith.maximumf %57, %58 : vector<8x48xf32>
    %60 = arith.truncf %59 : vector<8x48xf32> to vector<8x48xbf16>
    %cst_40 = arith.constant dense<0.000000e+00> : vector<8x48xf32>
    %61 = tpu.matmul %60, %44, %cst_40 {dimension_numbers = #tpu.dot_dimension_numbers<[1], [0], [0], [1], [0, 0, 1, 1], [], []>} : vector<8x48xbf16>, vector<48x48xbf16>, vector<8x48xf32> -> vector<8x48xf32>
    %62 = vector.broadcast %45 : vector<1x48xf32> to vector<8x48xf32>
    %63 = arith.addf %61, %62 : vector<8x48xf32>
    %64 = arith.truncf %63 : vector<8x48xf32> to vector<8x48xbf16>
    %cst_41 = arith.constant dense<0.000000e+00> : vector<8x128xf32>
    %65 = tpu.matmul %64, %11, %cst_41 {dimension_numbers = #tpu.dot_dimension_numbers<[1], [1], [0], [0], [0, 0, 1, 0], [], []>} : vector<8x48xbf16>, vector<128x48xbf16>, vector<8x128xf32> -> vector<8x128xf32>
    %c0_42 = arith.constant 0 : index
    %c0_43 = arith.constant 0 : index
    %c0_44 = arith.constant 0 : index
    %66 = vector.load %arg15[%c0_42, %c0_43, %c0_44] : memref<1x8x6xf32, #tpu.memory_space<vmem>>, vector<1x8x6xf32>
    %67 = vector.shape_cast %66 : vector<1x8x6xf32> to vector<8x6xf32>
    %68 = vector.shape_cast %50 : vector<8x6xf32> to vector<1x8x6xf32>
    tpu.vector_store %arg15[%c0_42, %c0_43, %c0_44], %68 {strides = array<i32>} : memref<1x8x6xf32, #tpu.memory_space<vmem>>, vector<1x8x6xf32>,
    %c0_45 = arith.constant 0 : index
    %c0_46 = arith.constant 0 : index
    %c0_47 = arith.constant 0 : index
    %69 = vector.load %arg16[%c0_45, %c0_46, %c0_47] : memref<1x8x128xf32, #tpu.memory_space<vmem>>, vector<1x8x128xf32>
    %70 = vector.shape_cast %69 : vector<1x8x128xf32> to vector<8x128xf32>
    %71 = vector.shape_cast %65 : vector<8x128xf32> to vector<1x8x128xf32>
    tpu.vector_store %arg16[%c0_45, %c0_46, %c0_47], %71 {strides = array<i32>} : memref<1x8x128xf32, #tpu.memory_space<vmem>>, vector<1x8x128xf32>,
    return
  }
  func.func @transform_0(%arg0: i32) -> (i32, i32, i32) {
    %c0_i32 = arith.constant 0 : i32
    %c0_i32_0 = arith.constant 0 : i32
    %c0_i32_1 = arith.constant 0 : i32
    return %arg0, %c0_i32, %c0_i32_0 : i32, i32, i32
  }
  func.func @transform_1(%arg0: i32) -> (i32, i32, i32) {
    %c0_i32 = arith.constant 0 : i32
    %c0_i32_0 = arith.constant 0 : i32
    %c0_i32_1 = arith.constant 0 : i32
    return %arg0, %c0_i32, %c0_i32_0 : i32, i32, i32
  }
  func.func @transform_2(%arg0: i32) -> (i32, i32) {
    %c0_i32 = arith.constant 0 : i32
    %c0_i32_0 = arith.constant 0 : i32
    %c0_i32_1 = arith.constant 0 : i32
    return %c0_i32, %c0_i32_0 : i32, i32
  }
  func.func @transform_3(%arg0: i32) -> (i32, i32) {
    %c0_i32 = arith.constant 0 : i32
    %c0_i32_0 = arith.constant 0 : i32
    %c0_i32_1 = arith.constant 0 : i32
    return %c0_i32, %c0_i32_0 : i32, i32
  }
  func.func @transform_4(%arg0: i32) -> (i32, i32, i32) {
    %c0_i32 = arith.constant 0 : i32
    %c0_i32_0 = arith.constant 0 : i32
    %c0_i32_1 = arith.constant 0 : i32
    return %arg0, %c0_i32, %c0_i32_0 : i32, i32, i32
  }
  func.func @transform_5(%arg0: i32) -> (i32, i32) {
    %c0_i32 = arith.constant 0 : i32
    %c0_i32_0 = arith.constant 0 : i32
    %c0_i32_1 = arith.constant 0 : i32
    return %c0_i32, %c0_i32_0 : i32, i32
  }
  func.func @transform_6(%arg0: i32) -> (i32, i32) {
    %c0_i32 = arith.constant 0 : i32
    %c0_i32_0 = arith.constant 0 : i32
    %c0_i32_1 = arith.constant 0 : i32
    return %c0_i32, %c0_i32_0 : i32, i32
  }
  func.func @transform_7(%arg0: i32) -> (i32, i32) {
    %c0_i32 = arith.constant 0 : i32
    %c0_i32_0 = arith.constant 0 : i32
    %c0_i32_1 = arith.constant 0 : i32
    return %c0_i32, %c0_i32_0 : i32, i32
  }
  func.func @transform_8(%arg0: i32) -> (i32, i32) {
    %c0_i32 = arith.constant 0 : i32
    %c0_i32_0 = arith.constant 0 : i32
    %c0_i32_1 = arith.constant 0 : i32
    return %c0_i32, %c0_i32_0 : i32, i32
  }
  func.func @transform_9(%arg0: i32) -> (i32, i32) {
    %c0_i32 = arith.constant 0 : i32
    %c0_i32_0 = arith.constant 0 : i32
    %c0_i32_1 = arith.constant 0 : i32
    return %c0_i32, %c0_i32_0 : i32, i32
  }
  func.func @transform_10(%arg0: i32) -> (i32, i32) {
    %c0_i32 = arith.constant 0 : i32
    %c0_i32_0 = arith.constant 0 : i32
    %c0_i32_1 = arith.constant 0 : i32
    return %c0_i32, %c0_i32_0 : i32, i32
  }
  func.func @transform_11(%arg0: i32) -> (i32, i32) {
    %c0_i32 = arith.constant 0 : i32
    %c0_i32_0 = arith.constant 0 : i32
    %c0_i32_1 = arith.constant 0 : i32
    return %c0_i32, %c0_i32_0 : i32, i32
  }
  func.func @transform_12(%arg0: i32) -> (i32, i32) {
    %c0_i32 = arith.constant 0 : i32
    %c0_i32_0 = arith.constant 0 : i32
    %c0_i32_1 = arith.constant 0 : i32
    return %c0_i32, %c0_i32_0 : i32, i32
  }
  func.func @transform_13(%arg0: i32) -> (i32, i32, i32) {
    %c0_i32 = arith.constant 0 : i32
    %c0_i32_0 = arith.constant 0 : i32
    %c0_i32_1 = arith.constant 0 : i32
    return %arg0, %c0_i32, %c0_i32_0 : i32, i32, i32
  }
  func.func @transform_14(%arg0: i32) -> (i32, i32, i32) {
    %c0_i32 = arith.constant 0 : i32
    %c0_i32_0 = arith.constant 0 : i32
    %c0_i32_1 = arith.constant 0 : i32
    return %arg0, %c0_i32, %c0_i32_0 : i32, i32, i32
  }
  func.func @transform_15(%arg0: i32) -> (i32, i32, i32) {
    %c0_i32 = arith.constant 0 : i32
    %c0_i32_0 = arith.constant 0 : i32
    %c0_i32_1 = arith.constant 0 : i32
    return %arg0, %c0_i32, %c0_i32_0 : i32, i32, i32
  }
}

</mosaic_0001>

<llo_original>
// kernel: tpu_custom_call.1
$region0: #{tpu_custom_call.1}
  #allocation0 [shape = 'u32[]', space=smem, size = 0x4, offset = 0x4, fixed_abs, tag = 'smem constant byte address 0x4 - core index']
  #allocation1 [shape = 'u32[144,128]{1,0:T(1,128)}', space=vmem, size = 0x12000, scoped, tag = 'internal scratch']
  %s0 = inlined_call_operand.vmem [shape: f32[2,128,24], index: 0, kind: input, shape index: {}]
  %s1 = inlined_call_operand.vmem [shape: f32[2,128,48], index: 1, kind: input, shape index: {}]
  %s2 = inlined_call_operand.vmem [shape: bf16[24,48], index: 2, kind: input, shape index: {}]
  %s3 = inlined_call_operand.vmem [shape: f32[1,48], index: 3, kind: input, shape index: {}]
  %s4 = inlined_call_operand.vmem [shape: bf16[2,8,48], index: 4, kind: input, shape index: {}]
  %s5 = inlined_call_operand.vmem [shape: f32[1,48], index: 5, kind: input, shape index: {}]
  %s6 = inlined_call_operand.vmem [shape: f32[1,48], index: 6, kind: input, shape index: {}]
  %s7 = inlined_call_operand.vmem [shape: bf16[48,54], index: 7, kind: input, shape index: {}]
  %s8 = inlined_call_operand.vmem [shape: f32[1,54], index: 8, kind: input, shape index: {}]
  %s9 = inlined_call_operand.vmem [shape: bf16[48,48], index: 9, kind: input, shape index: {}]
  %s10 = inlined_call_operand.vmem [shape: f32[1,48], index: 10, kind: input, shape index: {}]
  %s11 = inlined_call_operand.vmem [shape: bf16[48,48], index: 11, kind: input, shape index: {}]
  %s12 = inlined_call_operand.vmem [shape: f32[1,48], index: 12, kind: input, shape index: {}]
  %s13 = inlined_call_operand.vmem [shape: bf16[2,128,48], index: 13, kind: output, shape index: {0}]
  %s14 = inlined_call_operand.vmem [shape: f32[2,8,6], index: 14, kind: output, shape index: {1}]
  %s15 = inlined_call_operand.hbm [shape: f32[2,8,128], index: 15, kind: output, shape index: {2}]
  %16 = xla_tuple %s13, %s14, %s15
  %s17 = sld [smem:[#allocation0]]
  $region101: #{tpu_custom_call.1} parent=0
    _
  %s19 = ssub.s32 1, %s17
  %s20 = scalar_select 0, %s19, %s17
  $region1: #{tpu_custom_call.1} parent=0
    #allocation2 [shape = 'u8[8192]{0}', space=vmem, size = 0x2000, scoped, tag = 'output window, operand 2']
    #allocation3 [shape = 's32[2]{0}', space=sflag, size = 0x8, scoped, tag = 'scoped memory for tpu_custom_call.1']
    %21 = vsyncpa [#allocation3], 0
    %s22 = scalar_lea.sflag [#allocation3], 1
    %23 = vsyncpa %s22, 0
    loop: start=0, step=1, limit=4
    $region2: #{tpu_custom_call.1} parent=1 // loop_pre_header
      _
    $region3: #{tpu_custom_call.1} parent=1 // loop_header
      %s25 = sphi 0, %s29
      %p26 = scmp.ge.s32.totalorder %s25, 4
      %s35 = sphi 0, %s37
      %s38 = sphi 0, %s35
      %s39 = sphi 0, %s38
      %s55 = sphi 0, %s39
      %s61 = sphi 0, %s63
      %s64 = sphi 0, %s61
      %s65 = sphi 0, %s64
      %s81 = sphi 0, %s65
      %s85 = sphi 0, %s85
      %s87 = sphi 0, %s85
      %s88 = sphi 0, %s87
      %s102 = sphi 0, %s88
      %s106 = sphi 0, %s106
      %s108 = sphi 0, %s106
      %s109 = sphi 0, %s108
      %s123 = sphi 0, %s109
      %s129 = sphi 0, %s131
      %s132 = sphi 0, %s129
      %s133 = sphi 0, %s132
      %s149 = sphi 0, %s133
      %s153 = sphi 0, %s153
      %s155 = sphi 0, %s153
      %s156 = sphi 0, %s155
      %s170 = sphi 0, %s156
      %s174 = sphi 0, %s174
      %s176 = sphi 0, %s174
      %s177 = sphi 0, %s176
      %s191 = sphi 0, %s177
      %s195 = sphi 0, %s195
      %s197 = sphi 0, %s195
      %s198 = sphi 0, %s197
      %s212 = sphi 0, %s198
      %s216 = sphi 0, %s216
      %s218 = sphi 0, %s216
      %s219 = sphi 0, %s218
      %s233 = sphi 0, %s219
      %s237 = sphi 0, %s237
      %s239 = sphi 0, %s237
      %s240 = sphi 0, %s239
      %s254 = sphi 0, %s240
      %s258 = sphi 0, %s258
      %s260 = sphi 0, %s258
      %s261 = sphi 0, %s260
      %s275 = sphi 0, %s261
      %s279 = sphi 0, %s279
      %s281 = sphi 0, %s279
      %s282 = sphi 0, %s281
      %s296 = sphi 0, %s282
      %s300 = sphi 0, %s300
      %s302 = sphi 0, %s300
      %s303 = sphi 0, %s302
      %s317 = sphi 0, %s303
      %s323 = sphi 0, %s325
      %s326 = sphi 0, %s323
      %s327 = sphi 0, %s326
      %s343 = sphi 0, %s327
      %s349 = sphi 0, %s351
      %s352 = sphi 0, %s349
      %s353 = sphi 0, %s352
      %s369 = sphi 0, %s353
      %s375 = sphi 0, %s377
      %s378 = sphi 0, %s375
      %s379 = sphi 0, %s378
      %s395 = sphi 0, %s379
    $region4: #{tpu_custom_call.1} parent=1 // loop_header_branch
      %28 = sbr.rel (%p26) target = $region8
    $region5: #{tpu_custom_call.1} parent=1 // loop_body
      %s30 = ssub.s32 %s25, 1
      %s31 = ssub.s32 %s25, 2
      %s32 = sadd.s32 %s25, 1
      %s33 = ssub.s32 %s25, %s32
      %p34 = scmp.eq.s32.totalorder %s33, 0
      %s36 = sadd.s32 %s35, 1
      %s37 = scalar_select %p34, %s35, %s36
      %p40 = pneg %p34
      %p41 = scmp.eq.s32.totalorder %s25, 1
      %p42 = por %p40, %p41
      %p43 = scmp.ne.s32.totalorder %s35, %s38
      %p44 = scmp.eq.s32.totalorder %s25, 0
      %p45 = por %p43, %p44
      %p46 = scmp.ne.s32.totalorder %s35, %s38
      %p47 = scmp.eq.s32.totalorder %s30, 1
      %p48 = por %p46, %p47
      %p49 = scmp.ne.s32.totalorder %s38, %s39
      %p50 = scmp.eq.s32.totalorder %s30, 0
      %p51 = por %p49, %p50
      %p52 = scmp.ne.s32.totalorder %s38, %s39
      %p53 = scmp.eq.s32.totalorder %s31, 1
      %p54 = por %p52, %p53
      %p56 = scmp.ne.s32.totalorder %s39, %s55
      %p57 = scmp.eq.s32.totalorder %s31, 0
      %p58 = por %p56, %p57
      %s59 = ssub.s32 %s25, %s32
      %p60 = scmp.eq.s32.totalorder %s59, 0
      %s62 = sadd.s32 %s61, 1
      %s63 = scalar_select %p60, %s61, %s62
      %p66 = pneg %p60
      %p67 = scmp.eq.s32.totalorder %s25, 1
      %p68 = por %p66, %p67
      %p69 = scmp.ne.s32.totalorder %s61, %s64
      %p70 = scmp.eq.s32.totalorder %s25, 0
      %p71 = por %p69, %p70
      %p72 = scmp.ne.s32.totalorder %s61, %s64
      %p73 = scmp.eq.s32.totalorder %s30, 1
      %p74 = por %p72, %p73
      %p75 = scmp.ne.s32.totalorder %s64, %s65
      %p76 = scmp.eq.s32.totalorder %s30, 0
      %p77 = por %p75, %p76
      %p78 = scmp.ne.s32.totalorder %s64, %s65
      %p79 = scmp.eq.s32.totalorder %s31, 1
      %p80 = por %p78, %p79
      %p82 = scmp.ne.s32.totalorder %s65, %s81
      %p83 = scmp.eq.s32.totalorder %s31, 0
      %p84 = por %p82, %p83
      %s86 = sadd.s32 %s85, 1
      %p89 = scmp.eq.s32.totalorder %s25, 1
      %p90 = scmp.ne.s32.totalorder %s85, %s87
      %p91 = scmp.eq.s32.totalorder %s25, 0
      %p92 = por %p90, %p91
      %p93 = scmp.ne.s32.totalorder %s85, %s87
      %p94 = scmp.eq.s32.totalorder %s30, 1
      %p95 = por %p93, %p94
      %p96 = scmp.ne.s32.totalorder %s87, %s88
      %p97 = scmp.eq.s32.totalorder %s30, 0
      %p98 = por %p96, %p97
      %p99 = scmp.ne.s32.totalorder %s87, %s88
      %p100 = scmp.eq.s32.totalorder %s31, 1
      %p101 = por %p99, %p100
      %p103 = scmp.ne.s32.totalorder %s88, %s102
      %p104 = scmp.eq.s32.totalorder %s31, 0
      %p105 = por %p103, %p104
      %s107 = sadd.s32 %s106, 1
      %p110 = scmp.eq.s32.totalorder %s25, 1
      %p111 = scmp.ne.s32.totalorder %s106, %s108
      %p112 = scmp.eq.s32.totalorder %s25, 0
      %p113 = por %p111, %p112
      %p114 = scmp.ne.s32.totalorder %s106, %s108
      %p115 = scmp.eq.s32.totalorder %s30, 1
      %p116 = por %p114, %p115
      %p117 = scmp.ne.s32.totalorder %s108, %s109
      %p118 = scmp.eq.s32.totalorder %s30, 0
      %p119 = por %p117, %p118
      %p120 = scmp.ne.s32.totalorder %s108, %s109
      %p121 = scmp.eq.s32.totalorder %s31, 1
      %p122 = por %p120, %p121
      %p124 = scmp.ne.s32.totalorder %s109, %s123
      %p125 = scmp.eq.s32.totalorder %s31, 0
      %p126 = por %p124, %p125
      %s127 = ssub.s32 %s25, %s32
      %p128 = scmp.eq.s32.totalorder %s127, 0
      %s130 = sadd.s32 %s129, 1
      %s131 = scalar_select %p128, %s129, %s130
      %p134 = pneg %p128
      %p135 = scmp.eq.s32.totalorder %s25, 1
      %p136 = por %p134, %p135
      %p137 = scmp.ne.s32.totalorder %s129, %s132
      %p138 = scmp.eq.s32.totalorder %s25, 0
      %p139 = por %p137, %p138
      %p140 = scmp.ne.s32.totalorder %s129, %s132
      %p141 = scmp.eq.s32.totalorder %s30, 1
      %p142 = por %p140, %p141
      %p143 = scmp.ne.s32.totalorder %s132, %s133
      %p144 = scmp.eq.s32.totalorder %s30, 0
      %p145 = por %p143, %p144
      %p146 = scmp.ne.s32.totalorder %s132, %s133
      %p147 = scmp.eq.s32.totalorder %s31, 1
      %p148 = por %p146, %p147
      %p150 = scmp.ne.s32.totalorder %s133, %s149
      %p151 = scmp.eq.s32.totalorder %s31, 0
      %p152 = por %p150, %p151
      %s154 = sadd.s32 %s153, 1
      %p157 = scmp.eq.s32.totalorder %s25, 1
      %p158 = scmp.ne.s32.totalorder %s153, %s155
      %p159 = scmp.eq.s32.totalorder %s25, 0
      %p160 = por %p158, %p159
      %p161 = scmp.ne.s32.totalorder %s153, %s155
      %p162 = scmp.eq.s32.totalorder %s30, 1
      %p163 = por %p161, %p162
      %p164 = scmp.ne.s32.totalorder %s155, %s156
      %p165 = scmp.eq.s32.totalorder %s30, 0
      %p166 = por %p164, %p165
      %p167 = scmp.ne.s32.totalorder %s155, %s156
      %p168 = scmp.eq.s32.totalorder %s31, 1
      %p169 = por %p167, %p168
      %p171 = scmp.ne.s32.totalorder %s156, %s170
      %p172 = scmp.eq.s32.totalorder %s31, 0
      %p173 = por %p171, %p172
      %s175 = sadd.s32 %s174, 1
      %p178 = scmp.eq.s32.totalorder %s25, 1
      %p179 = scmp.ne.s32.totalorder %s174, %s176
      %p180 = scmp.eq.s32.totalorder %s25, 0
      %p181 = por %p179, %p180
      %p182 = scmp.ne.s32.totalorder %s174, %s176
      %p183 = scmp.eq.s32.totalorder %s30, 1
      %p184 = por %p182, %p183
      %p185 = scmp.ne.s32.totalorder %s176, %s177
      %p186 = scmp.eq.s32.totalorder %s30, 0
      %p187 = por %p185, %p186
      %p188 = scmp.ne.s32.totalorder %s176, %s177
      %p189 = scmp.eq.s32.totalorder %s31, 1
      %p190 = por %p188, %p189
      %p192 = scmp.ne.s32.totalorder %s177, %s191
      %p193 = scmp.eq.s32.totalorder %s31, 0
      %p194 = por %p192, %p193
      %s196 = sadd.s32 %s195, 1
      %p199 = scmp.eq.s32.totalorder %s25, 1
      %p200 = scmp.ne.s32.totalorder %s195, %s197
      %p201 = scmp.eq.s32.totalorder %s25, 0
      %p202 = por %p200, %p201
      %p203 = scmp.ne.s32.totalorder %s195, %s197
      %p204 = scmp.eq.s32.totalorder %s30, 1
      %p205 = por %p203, %p204
      %p206 = scmp.ne.s32.totalorder %s197, %s198
      %p207 = scmp.eq.s32.totalorder %s30, 0
      %p208 = por %p206, %p207
      %p209 = scmp.ne.s32.totalorder %s197, %s198
      %p210 = scmp.eq.s32.totalorder %s31, 1
      %p211 = por %p209, %p210
      %p213 = scmp.ne.s32.totalorder %s198, %s212
      %p214 = scmp.eq.s32.totalorder %s31, 0
      %p215 = por %p213, %p214
      %s217 = sadd.s32 %s216, 1
      %p220 = scmp.eq.s32.totalorder %s25, 1
      %p221 = scmp.ne.s32.totalorder %s216, %s218
      %p222 = scmp.eq.s32.totalorder %s25, 0
      %p223 = por %p221, %p222
      %p224 = scmp.ne.s32.totalorder %s216, %s218
      %p225 = scmp.eq.s32.totalorder %s30, 1
      %p226 = por %p224, %p225
      %p227 = scmp.ne.s32.totalorder %s218, %s219
      %p228 = scmp.eq.s32.totalorder %s30, 0
      %p229 = por %p227, %p228
      %p230 = scmp.ne.s32.totalorder %s218, %s219
      %p231 = scmp.eq.s32.totalorder %s31, 1
      %p232 = por %p230, %p231
      %p234 = scmp.ne.s32.totalorder %s219, %s233
      %p235 = scmp.eq.s32.totalorder %s31, 0
      %p236 = por %p234, %p235
      %s238 = sadd.s32 %s237, 1
      %p241 = scmp.eq.s32.totalorder %s25, 1
      %p242 = scmp.ne.s32.totalorder %s237, %s239
      %p243 = scmp.eq.s32.totalorder %s25, 0
      %p244 = por %p242, %p243
      %p245 = scmp.ne.s32.totalorder %s237, %s239
      %p246 = scmp.eq.s32.totalorder %s30, 1
      %p247 = por %p245, %p246
      %p248 = scmp.ne.s32.totalorder %s239, %s240
      %p249 = scmp.eq.s32.totalorder %s30, 0
      %p250 = por %p248, %p249
      %p251 = scmp.ne.s32.totalorder %s239, %s240
      %p252 = scmp.eq.s32.totalorder %s31, 1
      %p253 = por %p251, %p252
      %p255 = scmp.ne.s32.totalorder %s240, %s254
      %p256 = scmp.eq.s32.totalorder %s31, 0
      %p257 = por %p255, %p256
      %s259 = sadd.s32 %s258, 1
      %p262 = scmp.eq.s32.totalorder %s25, 1
      %p263 = scmp.ne.s32.totalorder %s258, %s260
      %p264 = scmp.eq.s32.totalorder %s25, 0
      %p265 = por %p263, %p264
      %p266 = scmp.ne.s32.totalorder %s258, %s260
      %p267 = scmp.eq.s32.totalorder %s30, 1
      %p268 = por %p266, %p267
      %p269 = scmp.ne.s32.totalorder %s260, %s261
      %p270 = scmp.eq.s32.totalorder %s30, 0
      %p271 = por %p269, %p270
      %p272 = scmp.ne.s32.totalorder %s260, %s261
      %p273 = scmp.eq.s32.totalorder %s31, 1
      %p274 = por %p272, %p273
      %p276 = scmp.ne.s32.totalorder %s261, %s275
      %p277 = scmp.eq.s32.totalorder %s31, 0
      %p278 = por %p276, %p277
      %s280 = sadd.s32 %s279, 1
      %p283 = scmp.eq.s32.totalorder %s25, 1
      %p284 = scmp.ne.s32.totalorder %s279, %s281
      %p285 = scmp.eq.s32.totalorder %s25, 0
      %p286 = por %p284, %p285
      %p287 = scmp.ne.s32.totalorder %s279, %s281
      %p288 = scmp.eq.s32.totalorder %s30, 1
      %p289 = por %p287, %p288
      %p290 = scmp.ne.s32.totalorder %s281, %s282
      %p291 = scmp.eq.s32.totalorder %s30, 0
      %p292 = por %p290, %p291
      %p293 = scmp.ne.s32.totalorder %s281, %s282
      %p294 = scmp.eq.s32.totalorder %s31, 1
      %p295 = por %p293, %p294
      %p297 = scmp.ne.s32.totalorder %s282, %s296
      %p298 = scmp.eq.s32.totalorder %s31, 0
      %p299 = por %p297, %p298
      %s301 = sadd.s32 %s300, 1
      %p304 = scmp.eq.s32.totalorder %s25, 1
      %p305 = scmp.ne.s32.totalorder %s300, %s302
      %p306 = scmp.eq.s32.totalorder %s25, 0
      %p307 = por %p305, %p306
      %p308 = scmp.ne.s32.totalorder %s300, %s302
      %p309 = scmp.eq.s32.totalorder %s30, 1
      %p310 = por %p308, %p309
      %p311 = scmp.ne.s32.totalorder %s302, %s303
      %p312 = scmp.eq.s32.totalorder %s30, 0
      %p313 = por %p311, %p312
      %p314 = scmp.ne.s32.totalorder %s302, %s303
      %p315 = scmp.eq.s32.totalorder %s31, 1
      %p316 = por %p314, %p315
      %p318 = scmp.ne.s32.totalorder %s303, %s317
      %p319 = scmp.eq.s32.totalorder %s31, 0
      %p320 = por %p318, %p319
      %s321 = ssub.s32 %s25, %s32
      %p322 = scmp.eq.s32.totalorder %s321, 0
      %s324 = sadd.s32 %s323, 1
      %s325 = scalar_select %p322, %s323, %s324
      %p328 = pneg %p322
      %p329 = scmp.eq.s32.totalorder %s25, 1
      %p330 = por %p328, %p329
      %p331 = scmp.ne.s32.totalorder %s323, %s326
      %p332 = scmp.eq.s32.totalorder %s25, 0
      %p333 = por %p331, %p332
      %p334 = scmp.ne.s32.totalorder %s323, %s326
      %p335 = scmp.eq.s32.totalorder %s30, 1
      %p336 = por %p334, %p335
      %p337 = scmp.ne.s32.totalorder %s326, %s327
      %p338 = scmp.eq.s32.totalorder %s30, 0
      %p339 = por %p337, %p338
      %p340 = scmp.ne.s32.totalorder %s326, %s327
      %p341 = scmp.eq.s32.totalorder %s31, 1
      %p342 = por %p340, %p341
      %p344 = scmp.ne.s32.totalorder %s327, %s343
      %p345 = scmp.eq.s32.totalorder %s31, 0
      %p346 = por %p344, %p345
      %s347 = ssub.s32 %s25, %s32
      %p348 = scmp.eq.s32.totalorder %s347, 0
      %s350 = sadd.s32 %s349, 1
      %s351 = scalar_select %p348, %s349, %s350
      %p354 = pneg %p348
      %p355 = scmp.eq.s32.totalorder %s25, 1
      %p356 = por %p354, %p355
      %p357 = scmp.ne.s32.totalorder %s349, %s352
      %p358 = scmp.eq.s32.totalorder %s25, 0
      %p359 = por %p357, %p358
      %p360 = scmp.ne.s32.totalorder %s349, %s352
      %p361 = scmp.eq.s32.totalorder %s30, 1
      %p362 = por %p360, %p361
      %p363 = scmp.ne.s32.totalorder %s352, %s353
      %p364 = scmp.eq.s32.totalorder %s30, 0
      %p365 = por %p363, %p364
      %p366 = scmp.ne.s32.totalorder %s352, %s353
      %p367 = scmp.eq.s32.totalorder %s31, 1
      %p368 = por %p366, %p367
      %p370 = scmp.ne.s32.totalorder %s353, %s369
      %p371 = scmp.eq.s32.totalorder %s31, 0
      %p372 = por %p370, %p371
      %s373 = ssub.s32 %s25, %s32
      %p374 = scmp.eq.s32.totalorder %s373, 0
      %s376 = sadd.s32 %s375, 1
      %s377 = scalar_select %p374, %s375, %s376
      %p380 = pneg %p374
      %p381 = scmp.eq.s32.totalorder %s25, 1
      %p382 = por %p380, %p381
      %p383 = scmp.ne.s32.totalorder %s375, %s378
      %p384 = scmp.eq.s32.totalorder %s25, 0
      %p385 = por %p383, %p384
      %p386 = scmp.ne.s32.totalorder %s375, %s378
      %p387 = scmp.eq.s32.totalorder %s30, 1
      %p388 = por %p386, %p387
      %p389 = scmp.ne.s32.totalorder %s378, %s379
      %p390 = scmp.eq.s32.totalorder %s30, 0
      %p391 = por %p389, %p390
      %p392 = scmp.ne.s32.totalorder %s378, %s379
      %p393 = scmp.eq.s32.totalorder %s31, 1
      %p394 = por %p392, %p393
      %p396 = scmp.ne.s32.totalorder %s379, %s395
      %p397 = scmp.eq.s32.totalorder %s31, 0
      %p398 = por %p396, %p397
      %p399 = scmp.le.s32.totalorder 1, %s25
      %p400 = scmp.lt.s32.totalorder %s25, 3
      %p401 = pnand %p399, %p400
      %p402 = pneg %p401
      // Predicated region
      $region9: #{tpu_custom_call.1} parent=5 // pred_check
        _
      $region10: #{tpu_custom_call.1} parent=5 // pred_check_branch
        %404 = sbr.rel (%p401) target = $region12
      $region11: #{tpu_custom_call.1} parent=5 // pred_region
        %s405 = ssub.s32 %s25, 1
        // Predicated region
        $region13: #{tpu_custom_call.1} parent=11 // pred_check
          %p406 = pneg %p98
        $region14: #{tpu_custom_call.1} parent=11 // pred_check_branch
          %408 = sbr.rel (%p406) target = $region16
        $region15: #{tpu_custom_call.1} parent=11 // pred_region
          _
        $region16: #{tpu_custom_call.1} parent=11 // pred_fallthru
          _
        // Predicated region
        $region17: #{tpu_custom_call.1} parent=11 // pred_check
          %p409 = pneg %p119
        $region18: #{tpu_custom_call.1} parent=11 // pred_check_branch
          %411 = sbr.rel (%p409) target = $region20
        $region19: #{tpu_custom_call.1} parent=11 // pred_region
          _
        $region20: #{tpu_custom_call.1} parent=11 // pred_fallthru
          _
        // Predicated region
        $region21: #{tpu_custom_call.1} parent=11 // pred_check
          %p412 = pneg %p166
        $region22: #{tpu_custom_call.1} parent=11 // pred_check_branch
          %414 = sbr.rel (%p412) target = $region24
        $region23: #{tpu_custom_call.1} parent=11 // pred_region
          _
        $region24: #{tpu_custom_call.1} parent=11 // pred_fallthru
          _
        // Predicated region
        $region25: #{tpu_custom_call.1} parent=11 // pred_check
          %p415 = pneg %p187
        $region26: #{tpu_custom_call.1} parent=11 // pred_check_branch
          %417 = sbr.rel (%p415) target = $region28
        $region27: #{tpu_custom_call.1} parent=11 // pred_region
          _
        $region28: #{tpu_custom_call.1} parent=11 // pred_fallthru
          _
        // Predicated region
        $region29: #{tpu_custom_call.1} parent=11 // pred_check
          %p418 = pneg %p208
        $region30: #{tpu_custom_call.1} parent=11 // pred_check_branch
          %420 = sbr.rel (%p418) target = $region32
        $region31: #{tpu_custom_call.1} parent=11 // pred_region
          _
        $region32: #{tpu_custom_call.1} parent=11 // pred_fallthru
          _
        // Predicated region
        $region33: #{tpu_custom_call.1} parent=11 // pred_check
          %p421 = pneg %p229
        $region34: #{tpu_custom_call.1} parent=11 // pred_check_branch
          %423 = sbr.rel (%p421) target = $region36
        $region35: #{tpu_custom_call.1} parent=11 // pred_region
          _
        $region36: #{tpu_custom_call.1} parent=11 // pred_fallthru
          _
        // Predicated region
        $region37: #{tpu_custom_call.1} parent=11 // pred_check
          %p424 = pneg %p250
        $region38: #{tpu_custom_call.1} parent=11 // pred_check_branch
          %426 = sbr.rel (%p424) target = $region40
        $region39: #{tpu_custom_call.1} parent=11 // pred_region
          _
        $region40: #{tpu_custom_call.1} parent=11 // pred_fallthru
          _
        // Predicated region
        $region41: #{tpu_custom_call.1} parent=11 // pred_check
          %p427 = pneg %p271
        $region42: #{tpu_custom_call.1} parent=11 // pred_check_branch
          %429 = sbr.rel (%p427) target = $region44
        $region43: #{tpu_custom_call.1} parent=11 // pred_region
          _
        $region44: #{tpu_custom_call.1} parent=11 // pred_fallthru
          _
        // Predicated region
        $region45: #{tpu_custom_call.1} parent=11 // pred_check
          %p430 = pneg %p292
        $region46: #{tpu_custom_call.1} parent=11 // pred_check_branch
          %432 = sbr.rel (%p430) target = $region48
        $region47: #{tpu_custom_call.1} parent=11 // pred_region
          _
        $region48: #{tpu_custom_call.1} parent=11 // pred_fallthru
          _
        // Predicated region
        $region49: #{tpu_custom_call.1} parent=11 // pred_check
          %p433 = pneg %p313
        $region50: #{tpu_custom_call.1} parent=11 // pred_check_branch
          %435 = sbr.rel (%p433) target = $region52
        $region51: #{tpu_custom_call.1} parent=11 // pred_region
          _
        $region52: #{tpu_custom_call.1} parent=11 // pred_fallthru
          _
      $region12: #{tpu_custom_call.1} parent=5 // pred_fallthru
        _
      %p436 = scmp.lt.s32.totalorder %s25, 2
      // Predicated region
      $region53: #{tpu_custom_call.1} parent=5 // pred_check
        %p437 = pneg %p436
      $region54: #{tpu_custom_call.1} parent=5 // pred_check_branch
        %439 = sbr.rel (%p437) target = $region56
      $region55: #{tpu_custom_call.1} parent=5 // pred_region
        // Predicated region
        $region57: #{tpu_custom_call.1} parent=55 // pred_check
          %p440 = pneg %p45
        $region58: #{tpu_custom_call.1} parent=55 // pred_check_branch
          %442 = sbr.rel (%p440) target = $region60
        $region59: #{tpu_custom_call.1} parent=55 // pred_region
          %p443 = scmp.lt.s32.totalorder %s25, 1
          %s444 = scalar_select %p443, %s25, 1
          %s445 = smul.addr %s444, 16
          %s446 = smul.addr %s445, 8
          %s447 = scalar_lea.vmem %s0, %s446
        $region60: #{tpu_custom_call.1} parent=55 // pred_fallthru
          _
        // Predicated region
        $region61: #{tpu_custom_call.1} parent=55 // pred_check
          %p448 = pneg %p71
        $region62: #{tpu_custom_call.1} parent=55 // pred_check_branch
          %450 = sbr.rel (%p448) target = $region64
        $region63: #{tpu_custom_call.1} parent=55 // pred_region
          %p451 = scmp.lt.s32.totalorder %s25, 1
          %s452 = scalar_select %p451, %s25, 1
          %s453 = smul.addr %s452, 16
          %s454 = smul.addr %s453, 8
          %s455 = scalar_lea.vmem %s1, %s454
        $region64: #{tpu_custom_call.1} parent=55 // pred_fallthru
          _
        // Predicated region
        $region65: #{tpu_custom_call.1} parent=55 // pred_check
          %p456 = pneg %p139
        $region66: #{tpu_custom_call.1} parent=55 // pred_check_branch
          %458 = sbr.rel (%p456) target = $region68
        $region67: #{tpu_custom_call.1} parent=55 // pred_region
          %p459 = scmp.lt.s32.totalorder %s25, 1
          %s460 = scalar_select %p459, %s25, 1
          %s461 = smul.addr %s460, 4
          %s462 = scalar_lea.vmem %s4, %s461
        $region68: #{tpu_custom_call.1} parent=55 // pred_fallthru
          _
      $region56: #{tpu_custom_call.1} parent=5 // pred_fallthru
        _
      %p463 = scmp.le.s32.totalorder 1, %s25
      %p464 = scmp.lt.s32.totalorder %s25, 3
      %p465 = pnand %p463, %p464
      %p466 = pneg %p465
      // Predicated region
      $region69: #{tpu_custom_call.1} parent=5 // pred_check
        _
      $region70: #{tpu_custom_call.1} parent=5 // pred_check_branch
        %468 = sbr.rel (%p465) target = $region72
      $region71: #{tpu_custom_call.1} parent=5 // pred_region
        %s469 = ssub.s32 %s25, 1
        %p470 = scmp.lt.s32.totalorder %s30, 1
        %s471 = scalar_select %p470, %s30, 1
        %s472 = smul.addr %s471, 16
        %s473 = smul.addr %s472, 8
        %s474 = scalar_lea.vmem %s0, %s473
        %p475 = pneg %p51
        %p476 = pneg %p48
        %p477 = scmp.lt.s32.totalorder %s30, 1
        %s478 = scalar_select %p477, %s30, 1
        %s479 = smul.addr %s478, 16
        %s480 = smul.addr %s479, 8
        %s481 = scalar_lea.vmem %s1, %s480
        %p482 = pneg %p77
        %p483 = pneg %p74
        %p484 = pneg %p98
        %p485 = pneg %p95
        %p486 = pneg %p119
        %p487 = pneg %p116
        %p488 = scmp.lt.s32.totalorder %s30, 1
        %s489 = scalar_select %p488, %s30, 1
        %s490 = smul.addr %s489, 4
        %s491 = scalar_lea.vmem %s4, %s490
        %p492 = pneg %p145
        %p493 = pneg %p142
        %p494 = pneg %p166
        %p495 = pneg %p163
        %p496 = pneg %p187
        %p497 = pneg %p184
        %p498 = pneg %p208
        %p499 = pneg %p205
        %p500 = pneg %p229
        %p501 = pneg %p226
        %p502 = pneg %p250
        %p503 = pneg %p247
        %p504 = pneg %p271
        %p505 = pneg %p268
        %p506 = pneg %p292
        %p507 = pneg %p289
        %p508 = pneg %p313
        %p509 = pneg %p310
        %p510 = pneg %p339
        %p511 = pneg %p336
        %p512 = scmp.lt.s32.totalorder %s30, 1
        %s513 = scalar_select %p512, %s30, 1
        %s514 = smul.addr %s513, 16
        %s515 = smul.addr %s514, 4
        %s516 = scalar_lea.vmem %s13, %s515
        %p517 = pneg %p365
        %p518 = pneg %p362
        %p519 = scmp.lt.s32.totalorder %s30, 1
        %s520 = scalar_select %p519, %s30, 1
        %s521 = smul.addr %s520, 8
        %s522 = scalar_lea.vmem %s14, %s521
        %p523 = pneg %p391
        %p524 = pneg %p388
        %s525 = sand.u32 %s378, 1
        %s526 = scalar_lea.sflag [#allocation3], %s525
        %s527 = sand.u32 %s378, 1
        %s528 = smul.addr %s527, 8
        %s529 = scalar_lea.vmem [#allocation2], %s528
        %p530 = scmp.lt.s32.totalorder %s30, 1
        %s531 = scalar_select %p530, %s30, 1
        %s532 = smul.addr %s531, 16
        %s533 = smul.addr %s532, 8
        %s534 = scalar_lea.vmem %s0, %s533
        %p535 = scmp.lt.s32.totalorder %s30, 1
        %s536 = scalar_select %p535, %s30, 1
        %s537 = smul.addr %s536, 16
        %s538 = smul.addr %s537, 8
        %s539 = scalar_lea.vmem %s1, %s538
        %p540 = scmp.lt.s32.totalorder %s30, 1
        %s541 = scalar_select %p540, %s30, 1
        %s542 = smul.addr %s541, 4
        %s543 = scalar_lea.vmem %s4, %s542
        %p544 = scmp.lt.s32.totalorder %s30, 1
        %s545 = scalar_select %p544, %s30, 1
        %s546 = smul.addr %s545, 16
        %s547 = smul.addr %s546, 4
        %s548 = scalar_lea.vmem %s13, %s547
        %p549 = scmp.lt.s32.totalorder %s30, 1
        %s550 = scalar_select %p549, %s30, 1
        %s551 = smul.addr %s550, 8
        %s552 = scalar_lea.vmem %s14, %s551
        %v554 = vld [vmem:[%s534] sm:$0xff]
        %v555 = vld [vmem:[%s534 + $0x8] sm:$0xff]
        %v556 = vld [vmem:[%s534 + $0x10] sm:$0xff]
        %v557 = vld [vmem:[%s534 + $0x18] sm:$0xff]
        %v558 = vld [vmem:[%s534 + $0x20] sm:$0xff]
        %v559 = vld [vmem:[%s534 + $0x28] sm:$0xff]
        %v560 = vld [vmem:[%s534 + $0x30] sm:$0xff]
        %v561 = vld [vmem:[%s534 + $0x38] sm:$0xff]
        %v562 = vld [vmem:[%s534 + $0x40] sm:$0xff]
        %v563 = vld [vmem:[%s534 + $0x48] sm:$0xff]
        %v564 = vld [vmem:[%s534 + $0x50] sm:$0xff]
        %v565 = vld [vmem:[%s534 + $0x58] sm:$0xff]
        %v566 = vld [vmem:[%s534 + $0x60] sm:$0xff]
        %v567 = vld [vmem:[%s534 + $0x68] sm:$0xff]
        %v568 = vld [vmem:[%s534 + $0x70] sm:$0xff]
        %v569 = vld [vmem:[%s534 + $0x78] sm:$0xff]
        %v570 = vld [vmem:[%s2] sm:$0xf]
        %v571 = vld [vmem:[%s2 + $0x4] sm:$0xf]
        %v572 = vld [vmem:[%s2 + $0x8] sm:$0xf]
        %v573 = vpack.c.bf16 %v555, %v554
        %v574 = vpack.c.bf16 %v557, %v556
        %v575 = vpack.c.bf16 %v559, %v558
        %v576 = vpack.c.bf16 %v561, %v560
        %v577 = vpack.c.bf16 %v563, %v562
        %v578 = vpack.c.bf16 %v565, %v564
        %v579 = vpack.c.bf16 %v567, %v566
        %v580 = vpack.c.bf16 %v569, %v568
        %v581 = vld [vmem:[%s3] sm:$0x1]
        %v583 = vlaneseq
        %v584 = vshrl.u32 %v583, 7
        %v585 = vsub.s32 0, %v584
        %v586 = vrot.slane %v581, %v585
        %v591 = vunpack.c.l.b16 %v570
        %v592 = vunpack.c.l.b16 %v571
        %v593 = vunpack.c.l.b16 %v572
        %v594 = vpack.c.b16 %v592, %v591
        %v595 = vpack.c.b16 %v593, %v593
        %vm597 = vcmask 195584
        %v599 = vsel %vm597, %v573, 0
        %v602 = vsel %vm597, %v574, 0
        %v605 = vsel %vm597, %v575, 0
        %v608 = vsel %vm597, %v576, 0
        %v611 = vsel %vm597, %v577, 0
        %v614 = vsel %vm597, %v578, 0
        %v617 = vsel %vm597, %v579, 0
        %v620 = vsel %vm597, %v580, 0
        %vm622 = vcmask 1043456
        %v624 = vsel %vm622, %v595, 0
        %626 = vmatprep.subr.bf16.mxu0 0
        %627 = vmatpush1.bf16.msra.mxu0 %v594
        %628 = vmatprep.subr.bf16.mxu0 0
        %629 = vmatpush1.bf16.msra.mxu0 %v624
        %630 = vmatprep.subr.bf16.mxu0 0
        %631 = vmatpush1.bf16.msra.mxu0 0
        %632 = vmatprep.subr.bf16.mxu0 0
        %633 = vmatpush1.bf16.msra.mxu0 0
        %634 = vmatprep.subr.bf16.mxu0 0
        %635 = vmatpush1.bf16.msra.mxu0 0
        %636 = vmatprep.subr.bf16.mxu0 0
        %637 = vmatpush1.bf16.msra.mxu0 0
        %638 = vmatprep.subr.bf16.mxu0 0
        %639 = vmatpush1.bf16.msra.mxu0 0
        %640 = vmatprep.subr.bf16.mxu0 0
        %641 = vmatpush1.bf16.msra.mxu0 0
        %642 = vmatprep.subr.bf16.mxu0 0
        %643 = vmatpush1.bf16.msra.mxu0 0
        %644 = vmatprep.subr.bf16.mxu0 0
        %645 = vmatpush1.bf16.msra.mxu0 0
        %646 = vmatprep.subr.bf16.mxu0 0
        %647 = vmatpush1.bf16.msra.mxu0 0
        %648 = vmatprep.subr.bf16.mxu0 0
        %649 = vmatpush1.bf16.msra.mxu0 0
        %650 = vmatprep.subr.bf16.mxu0 0
        %651 = vmatpush1.bf16.msra.mxu0 0
        %652 = vmatprep.subr.bf16.mxu0 0
        %653 = vmatpush1.bf16.msra.mxu0 0
        %654 = vmatprep.subr.bf16.mxu0 0
        %655 = vmatpush1.bf16.msra.mxu0 0
        %656 = vmatprep.subr.bf16.mxu0 0
        %657 = vmatpush1.bf16.msra.mxu0 0
        %658 = vmatprep.mubr.bf16.mxu0 0
        %659 = vmatmul.mubr.bf16.gmra.mrb[0].mxu0 %v599
        %v660 = vpop.f32.mrb[0].mxu0
        %v661 = vadd.f32 %v586, %v660
        %v662 = vpop.f32.mrb[0].mxu0
        %v663 = vpop.f32.mrb[0].mxu0
        %v664 = vadd.f32 %v586, %v663
        %v665 = vpop.f32.mrb[0].mxu0
        %666 = vmatprep.mubr.bf16.mxu0 0
        %667 = vmatmul.mubr.bf16.gmra.mrb[0].mxu0 %v602
        %v668 = vpop.f32.mrb[0].mxu0
        %v669 = vadd.f32 %v586, %v668
        %v670 = vpop.f32.mrb[0].mxu0
        %v671 = vpop.f32.mrb[0].mxu0
        %v672 = vadd.f32 %v586, %v671
        %v673 = vpop.f32.mrb[0].mxu0
        %674 = vmatprep.mubr.bf16.mxu0 0
        %675 = vmatmul.mubr.bf16.gmra.mrb[0].mxu0 %v605
        %v676 = vpop.f32.mrb[0].mxu0
        %v677 = vadd.f32 %v586, %v676
        %v678 = vpop.f32.mrb[0].mxu0
        %v679 = vpop.f32.mrb[0].mxu0
        %v680 = vadd.f32 %v586, %v679
        %v681 = vpop.f32.mrb[0].mxu0
        %682 = vmatprep.mubr.bf16.mxu0 0
        %683 = vmatmul.mubr.bf16.gmra.mrb[0].mxu0 %v608
        %v684 = vpop.f32.mrb[0].mxu0
        %v685 = vadd.f32 %v586, %v684
        %v686 = vpop.f32.mrb[0].mxu0
        %v687 = vpop.f32.mrb[0].mxu0
        %v688 = vadd.f32 %v586, %v687
        %v689 = vpop.f32.mrb[0].mxu0
        %690 = vmatprep.mubr.bf16.mxu0 0
        %691 = vmatmul.mubr.bf16.gmra.mrb[0].mxu0 %v611
        %v692 = vpop.f32.mrb[0].mxu0
        %v693 = vadd.f32 %v586, %v692
        %v694 = vpop.f32.mrb[0].mxu0
        %v695 = vpop.f32.mrb[0].mxu0
        %v696 = vadd.f32 %v586, %v695
        %v697 = vpop.f32.mrb[0].mxu0
        %698 = vmatprep.mubr.bf16.mxu0 0
        %699 = vmatmul.mubr.bf16.gmra.mrb[0].mxu0 %v614
        %v700 = vpop.f32.mrb[0].mxu0
        %v701 = vadd.f32 %v586, %v700
        %v702 = vpop.f32.mrb[0].mxu0
        %v703 = vpop.f32.mrb[0].mxu0
        %v704 = vadd.f32 %v586, %v703
        %v705 = vpop.f32.mrb[0].mxu0
        %706 = vmatprep.mubr.bf16.mxu0 0
        %707 = vmatmul.mubr.bf16.gmra.mrb[0].mxu0 %v617
        %v708 = vpop.f32.mrb[0].mxu0
        %v709 = vadd.f32 %v586, %v708
        %v710 = vpop.f32.mrb[0].mxu0
        %v711 = vpop.f32.mrb[0].mxu0
        %v712 = vadd.f32 %v586, %v711
        %v713 = vpop.f32.mrb[0].mxu0
        %714 = vmatprep.mubr.bf16.mxu0 0
        %715 = vmatmul.mubr.bf16.gmra.mrb[0].mxu0 %v620
        %v716 = vpop.f32.mrb[0].mxu0
        %v717 = vadd.f32 %v586, %v716
        %v718 = vpop.f32.mrb[0].mxu0
        %v719 = vpop.f32.mrb[0].mxu0
        %v720 = vadd.f32 %v586, %v719
        %v721 = vpop.f32.mrb[0].mxu0
        %722 = vdwg.mxu0
        %v723 = vld [vmem:[%s539] sm:$0xff]
        %v724 = vld [vmem:[%s539 + $0x8] sm:$0xff]
        %v725 = vld [vmem:[%s539 + $0x10] sm:$0xff]
        %v726 = vld [vmem:[%s539 + $0x18] sm:$0xff]
        %v727 = vld [vmem:[%s539 + $0x20] sm:$0xff]
        %v728 = vld [vmem:[%s539 + $0x28] sm:$0xff]
        %v729 = vld [vmem:[%s539 + $0x30] sm:$0xff]
        %v730 = vld [vmem:[%s539 + $0x38] sm:$0xff]
        %v731 = vld [vmem:[%s539 + $0x40] sm:$0xff]
        %v732 = vld [vmem:[%s539 + $0x48] sm:$0xff]
        %v733 = vld [vmem:[%s539 + $0x50] sm:$0xff]
        %v734 = vld [vmem:[%s539 + $0x58] sm:$0xff]
        %v735 = vld [vmem:[%s539 + $0x60] sm:$0xff]
        %v736 = vld [vmem:[%s539 + $0x68] sm:$0xff]
        %v737 = vld [vmem:[%s539 + $0x70] sm:$0xff]
        %v738 = vld [vmem:[%s539 + $0x78] sm:$0xff]
        %v739 = vadd.f32 %v661, %v723
        %v740 = vadd.f32 %v664, %v724
        %v741 = vadd.f32 %v669, %v725
        %v742 = vadd.f32 %v672, %v726
        %v743 = vadd.f32 %v677, %v727
        %v744 = vadd.f32 %v680, %v728
        %v745 = vadd.f32 %v685, %v729
        %v746 = vadd.f32 %v688, %v730
        %v747 = vadd.f32 %v693, %v731
        %v748 = vadd.f32 %v696, %v732
        %v749 = vadd.f32 %v701, %v733
        %v750 = vadd.f32 %v704, %v734
        %v751 = vadd.f32 %v709, %v735
        %v752 = vadd.f32 %v712, %v736
        %v753 = vadd.f32 %v717, %v737
        %v754 = vadd.f32 %v720, %v738
        %v755 = vpack.c.bf16 %v740, %v739
        %v756 = vpack.c.bf16 %v742, %v741
        %v757 = vpack.c.bf16 %v744, %v743
        %v758 = vpack.c.bf16 %v746, %v745
        %v759 = vpack.c.bf16 %v748, %v747
        %v760 = vpack.c.bf16 %v750, %v749
        %v761 = vpack.c.bf16 %v752, %v751
        %v762 = vpack.c.bf16 %v754, %v753
        %v771 = vunpack.c.l.b16 %v755
        %v772 = vunpack.c.h.b16 %v755
        %v773 = vunpack.c.l.b16 %v756
        %v774 = vunpack.c.h.b16 %v756
        %v775 = vunpack.c.l.b16 %v757
        %v776 = vunpack.c.h.b16 %v757
        %v777 = vunpack.c.l.b16 %v758
        %v778 = vunpack.c.h.b16 %v758
        %v779 = vunpack.c.l.b16 %v759
        %v780 = vunpack.c.h.b16 %v759
        %v781 = vunpack.c.l.b16 %v760
        %v782 = vunpack.c.h.b16 %v760
        %v783 = vunpack.c.l.b16 %v761
        %v784 = vunpack.c.h.b16 %v761
        %v785 = vunpack.c.l.b16 %v762
        %v786 = vunpack.c.h.b16 %v762
        %v787 = vpack.c.b16 %v771, %v771
        %v788 = vpack.c.b16 %v772, %v772
        %v789 = vpack.c.b16 %v773, %v773
        %v790 = vpack.c.b16 %v774, %v774
        %v791 = vpack.c.b16 %v775, %v775
        %v792 = vpack.c.b16 %v776, %v776
        %v793 = vpack.c.b16 %v777, %v777
        %v794 = vpack.c.b16 %v778, %v778
        %v795 = vpack.c.b16 %v779, %v779
        %v796 = vpack.c.b16 %v780, %v780
        %v797 = vpack.c.b16 %v781, %v781
        %v798 = vpack.c.b16 %v782, %v782
        %v799 = vpack.c.b16 %v783, %v783
        %v800 = vpack.c.b16 %v784, %v784
        %v801 = vpack.c.b16 %v785, %v785
        %v802 = vpack.c.b16 %v786, %v786
        %vm819 = vcmask 388096
        %820 = vst.msk [vmem:[%s548] sm:$0xf] %vm819, %v787
        %821 = vst.msk [vmem:[%s548 + $0x4] sm:$0xf] %vm819, %v788
        %822 = vst.msk [vmem:[%s548 + $0x8] sm:$0xf] %vm819, %v789
        %823 = vst.msk [vmem:[%s548 + $0xc] sm:$0xf] %vm819, %v790
        %824 = vst.msk [vmem:[%s548 + $0x10] sm:$0xf] %vm819, %v791
        %825 = vst.msk [vmem:[%s548 + $0x14] sm:$0xf] %vm819, %v792
        %826 = vst.msk [vmem:[%s548 + $0x18] sm:$0xf] %vm819, %v793
        %827 = vst.msk [vmem:[%s548 + $0x1c] sm:$0xf] %vm819, %v794
        %828 = vst.msk [vmem:[%s548 + $0x20] sm:$0xf] %vm819, %v795
        %829 = vst.msk [vmem:[%s548 + $0x24] sm:$0xf] %vm819, %v796
        %830 = vst.msk [vmem:[%s548 + $0x28] sm:$0xf] %vm819, %v797
        %831 = vst.msk [vmem:[%s548 + $0x2c] sm:$0xf] %vm819, %v798
        %832 = vst.msk [vmem:[%s548 + $0x30] sm:$0xf] %vm819, %v799
        %833 = vst.msk [vmem:[%s548 + $0x34] sm:$0xf] %vm819, %v800
        %834 = vst.msk [vmem:[%s548 + $0x38] sm:$0xf] %vm819, %v801
        %835 = vst.msk [vmem:[%s548 + $0x3c] sm:$0xf] %vm819, %v802
        %v836 = vld [vmem:[%s543] sm:$0xf]
        %v837 = vunpack.c.l.bf16 %v836
        %v838 = vld [vmem:[%s5] sm:$0x1]
        %v839 = vld [vmem:[%s6] sm:$0x1]
        %vm840 = vcmask 392192
        %v841 = vsel %vm840, %v837, 0.0
        %842 = vadd.xlane.f32.xlu0 %v841
        %v843 = vpop.xlane.xlu0 %842
        %v844 = vrcp.pop 48.0
        %v845 = vmul.f32 %v843, %v844
        %v846 = vsub.f32 %v837, %v845
        %v847 = vmul.f32 %v846, %v846
        %v848 = vsel %vm840, %v847, 0.0
        %849 = vadd.xlane.f32.xlu0 %v848
        %v850 = vpop.xlane.xlu0 %849
        %v851 = vmul.f32 %v850, %v844
        %v852 = vadd.f32 %v851, 1e-05
        %v853 = vrsqrt.pop %v852
        %v854 = vmul.f32 %v846, %v853
        %v856 = vlaneseq
        %v857 = vshrl.u32 %v856, 7
        %v858 = vsub.s32 0, %v857
        %v859 = vrot.slane %v838, %v858
        %v861 = vmul.f32 %v854, %v859
        %v863 = vlaneseq
        %v864 = vshrl.u32 %v863, 7
        %v865 = vsub.s32 0, %v864
        %v866 = vrot.slane %v839, %v865
        %v868 = vadd.f32 %v861, %v866
        %v869 = vld [vmem:[%s7] sm:$0xf]
        %v870 = vld [vmem:[%s7 + $0x4] sm:$0xf]
        %v871 = vld [vmem:[%s7 + $0x8] sm:$0xf]
        %v872 = vld [vmem:[%s7 + $0xc] sm:$0xf]
        %v873 = vld [vmem:[%s7 + $0x10] sm:$0xf]
        %v874 = vld [vmem:[%s7 + $0x14] sm:$0xf]
        %v875 = vld [vmem:[%s8] sm:$0x1]
        %v876 = vld [vmem:[%s9] sm:$0xf]
        %v877 = vld [vmem:[%s9 + $0x4] sm:$0xf]
        %v878 = vld [vmem:[%s9 + $0x8] sm:$0xf]
        %v879 = vld [vmem:[%s9 + $0xc] sm:$0xf]
        %v880 = vld [vmem:[%s9 + $0x10] sm:$0xf]
        %v881 = vld [vmem:[%s9 + $0x14] sm:$0xf]
        %v882 = vld [vmem:[%s10] sm:$0x1]
        %v883 = vld [vmem:[%s11] sm:$0xf]
        %v884 = vld [vmem:[%s11 + $0x4] sm:$0xf]
        %v885 = vld [vmem:[%s11 + $0x8] sm:$0xf]
        %v886 = vld [vmem:[%s11 + $0xc] sm:$0xf]
        %v887 = vld [vmem:[%s11 + $0x10] sm:$0xf]
        %v888 = vld [vmem:[%s11 + $0x14] sm:$0xf]
        %v889 = vld [vmem:[%s12] sm:$0x1]
        %v890 = vpack.c.bf16 %v868, %v868
        %v892 = vlaneseq
        %v893 = vshrl.u32 %v892, 7
        %v894 = vsub.s32 0, %v893
        %v895 = vrot.slane %v875, %v894
        %v903 = vunpack.c.l.b16 %v869
        %v904 = vunpack.c.l.b16 %v870
        %v905 = vunpack.c.l.b16 %v871
        %v906 = vunpack.c.l.b16 %v872
        %v907 = vunpack.c.l.b16 %v873
        %v908 = vunpack.c.l.b16 %v874
        %v909 = vpack.c.b16 %v904, %v903
        %v910 = vpack.c.b16 %v906, %v905
        %v911 = vpack.c.b16 %v908, %v907
        %v916 = vsel %vm840, %v890, 0
        %918 = vmatprep.subr.bf16.mxu0 0
        %919 = vmatpush1.bf16.msra.mxu0 %v909
        %920 = vmatprep.subr.bf16.mxu0 0
        %921 = vmatpush1.bf16.msra.mxu0 %v910
        %922 = vmatprep.subr.bf16.mxu0 0
        %923 = vmatpush1.bf16.msra.mxu0 %v911
        %924 = vmatprep.subr.bf16.mxu0 0
        %925 = vmatpush1.bf16.msra.mxu0 0
        %926 = vmatprep.subr.bf16.mxu0 0
        %927 = vmatpush1.bf16.msra.mxu0 0
        %928 = vmatprep.subr.bf16.mxu0 0
        %929 = vmatpush1.bf16.msra.mxu0 0
        %930 = vmatprep.subr.bf16.mxu0 0
        %931 = vmatpush1.bf16.msra.mxu0 0
        %932 = vmatprep.subr.bf16.mxu0 0
        %933 = vmatpush1.bf16.msra.mxu0 0
        %934 = vmatprep.subr.bf16.mxu0 0
        %935 = vmatpush1.bf16.msra.mxu0 0
        %936 = vmatprep.subr.bf16.mxu0 0
        %937 = vmatpush1.bf16.msra.mxu0 0
        %938 = vmatprep.subr.bf16.mxu0 0
        %939 = vmatpush1.bf16.msra.mxu0 0
        %940 = vmatprep.subr.bf16.mxu0 0
        %941 = vmatpush1.bf16.msra.mxu0 0
        %942 = vmatprep.subr.bf16.mxu0 0
        %943 = vmatpush1.bf16.msra.mxu0 0
        %944 = vmatprep.subr.bf16.mxu0 0
        %945 = vmatpush1.bf16.msra.mxu0 0
        %946 = vmatprep.subr.bf16.mxu0 0
        %947 = vmatpush1.bf16.msra.mxu0 0
        %948 = vmatprep.subr.bf16.mxu0 0
        %949 = vmatpush1.bf16.msra.mxu0 0
        %950 = vmatprep.mubr.bf16.mxu0 0
        %951 = vmatmul.mubr.bf16.gmra.mrb[0].mxu0 %v916
        %v952 = vpop.f32.mrb[0].mxu0
        %v953 = vadd.f32 %v895, %v952
        %v954 = vpop.f32.mrb[0].mxu0
        %v955 = vpop.f32.mrb[0].mxu0
        %v956 = vpop.f32.mrb[0].mxu0
        %957 = vdwg.mxu0
        %v958 = vmax.f32 %v953, 0.0
        %v959 = vpack.c.bf16 %v958, %v958
        %v961 = vlaneseq
        %v962 = vshrl.u32 %v961, 7
        %v963 = vsub.s32 0, %v962
        %v964 = vrot.slane %v882, %v963
        %v972 = vunpack.c.l.b16 %v876
        %v973 = vunpack.c.l.b16 %v877
        %v974 = vunpack.c.l.b16 %v878
        %v975 = vunpack.c.l.b16 %v879
        %v976 = vunpack.c.l.b16 %v880
        %v977 = vunpack.c.l.b16 %v881
        %v978 = vpack.c.b16 %v973, %v972
        %v979 = vpack.c.b16 %v975, %v974
        %v980 = vpack.c.b16 %v977, %v976
        %v985 = vsel %vm840, %v959, 0
        %987 = vmatprep.subr.bf16.mxu0 0
        %988 = vmatpush1.bf16.msra.mxu0 %v978
        %989 = vmatprep.subr.bf16.mxu0 0
        %990 = vmatpush1.bf16.msra.mxu0 %v979
        %991 = vmatprep.subr.bf16.mxu0 0
        %992 = vmatpush1.bf16.msra.mxu0 %v980
        %993 = vmatprep.subr.bf16.mxu0 0
        %994 = vmatpush1.bf16.msra.mxu0 0
        %995 = vmatprep.subr.bf16.mxu0 0
        %996 = vmatpush1.bf16.msra.mxu0 0
        %997 = vmatprep.subr.bf16.mxu0 0
        %998 = vmatpush1.bf16.msra.mxu0 0
        %999 = vmatprep.subr.bf16.mxu0 0
        %1000 = vmatpush1.bf16.msra.mxu0 0
        %1001 = vmatprep.subr.bf16.mxu0 0
        %1002 = vmatpush1.bf16.msra.mxu0 0
        %1003 = vmatprep.subr.bf16.mxu0 0
        %1004 = vmatpush1.bf16.msra.mxu0 0
        %1005 = vmatprep.subr.bf16.mxu0 0
        %1006 = vmatpush1.bf16.msra.mxu0 0
        %1007 = vmatprep.subr.bf16.mxu0 0
        %1008 = vmatpush1.bf16.msra.mxu0 0
        %1009 = vmatprep.subr.bf16.mxu0 0
        %1010 = vmatpush1.bf16.msra.mxu0 0
        %1011 = vmatprep.subr.bf16.mxu0 0
        %1012 = vmatpush1.bf16.msra.mxu0 0
        %1013 = vmatprep.subr.bf16.mxu0 0
        %1014 = vmatpush1.bf16.msra.mxu0 0
        %1015 = vmatprep.subr.bf16.mxu0 0
        %1016 = vmatpush1.bf16.msra.mxu0 0
        %1017 = vmatprep.subr.bf16.mxu0 0
        %1018 = vmatpush1.bf16.msra.mxu0 0
        %1019 = vmatprep.mubr.bf16.mxu0 0
        %1020 = vmatmul.mubr.bf16.gmra.mrb[0].mxu0 %v985
        %v1021 = vpop.f32.mrb[0].mxu0
        %v1022 = vadd.f32 %v964, %v1021
        %v1023 = vpop.f32.mrb[0].mxu0
        %v1024 = vpop.f32.mrb[0].mxu0
        %v1025 = vpop.f32.mrb[0].mxu0
        %1026 = vdwg.mxu0
        %v1027 = vmax.f32 %v1022, 0.0
        %v1028 = vpack.c.bf16 %v1027, %v1027
        %v1030 = vlaneseq
        %v1031 = vshrl.u32 %v1030, 7
        %v1032 = vsub.s32 0, %v1031
        %v1033 = vrot.slane %v889, %v1032
        %v1041 = vunpack.c.l.b16 %v883
        %v1042 = vunpack.c.l.b16 %v884
        %v1043 = vunpack.c.l.b16 %v885
        %v1044 = vunpack.c.l.b16 %v886
        %v1045 = vunpack.c.l.b16 %v887
        %v1046 = vunpack.c.l.b16 %v888
        %v1047 = vpack.c.b16 %v1042, %v1041
        %v1048 = vpack.c.b16 %v1044, %v1043
        %v1049 = vpack.c.b16 %v1046, %v1045
        %v1054 = vsel %vm840, %v1028, 0
        %1056 = vmatprep.subr.bf16.mxu0 0
        %1057 = vmatpush1.bf16.msra.mxu0 %v1047
        %1058 = vmatprep.subr.bf16.mxu0 0
        %1059 = vmatpush1.bf16.msra.mxu0 %v1048
        %1060 = vmatprep.subr.bf16.mxu0 0
        %1061 = vmatpush1.bf16.msra.mxu0 %v1049
        %1062 = vmatprep.subr.bf16.mxu0 0
        %1063 = vmatpush1.bf16.msra.mxu0 0
        %1064 = vmatprep.subr.bf16.mxu0 0
        %1065 = vmatpush1.bf16.msra.mxu0 0
        %1066 = vmatprep.subr.bf16.mxu0 0
        %1067 = vmatpush1.bf16.msra.mxu0 0
        %1068 = vmatprep.subr.bf16.mxu0 0
        %1069 = vmatpush1.bf16.msra.mxu0 0
        %1070 = vmatprep.subr.bf16.mxu0 0
        %1071 = vmatpush1.bf16.msra.mxu0 0
        %1072 = vmatprep.subr.bf16.mxu0 0
        %1073 = vmatpush1.bf16.msra.mxu0 0
        %1074 = vmatprep.subr.bf16.mxu0 0
        %1075 = vmatpush1.bf16.msra.mxu0 0
        %1076 = vmatprep.subr.bf16.mxu0 0
        %1077 = vmatpush1.bf16.msra.mxu0 0
        %1078 = vmatprep.subr.bf16.mxu0 0
        %1079 = vmatpush1.bf16.msra.mxu0 0
        %1080 = vmatprep.subr.bf16.mxu0 0
        %1081 = vmatpush1.bf16.msra.mxu0 0
        %1082 = vmatprep.subr.bf16.mxu0 0
        %1083 = vmatpush1.bf16.msra.mxu0 0
        %1084 = vmatprep.subr.bf16.mxu0 0
        %1085 = vmatpush1.bf16.msra.mxu0 0
        %1086 = vmatprep.subr.bf16.mxu0 0
        %1087 = vmatpush1.bf16.msra.mxu0 0
        %1088 = vmatprep.mubr.bf16.mxu0 0
        %1089 = vmatmul.mubr.bf16.gmra.mrb[0].mxu0 %v1054
        %v1090 = vpop.f32.mrb[0].mxu0
        %v1091 = vadd.f32 %v1033, %v1090
        %v1092 = vpop.f32.mrb[0].mxu0
        %v1093 = vpop.f32.mrb[0].mxu0
        %v1094 = vpop.f32.mrb[0].mxu0
        %1095 = vdwg.mxu0
        %v1096 = vpack.c.bf16 %v1091, %v1091
        %v1098 = vsel %vm840, %v1096, 0
        %v1101 = vsel %vm840, %v755, 0
        %v1104 = vsel %vm840, %v756, 0
        %v1107 = vsel %vm840, %v757, 0
        %v1110 = vsel %vm840, %v758, 0
        %v1113 = vsel %vm840, %v759, 0
        %v1116 = vsel %vm840, %v760, 0
        %v1119 = vsel %vm840, %v761, 0
        %v1122 = vsel %vm840, %v762, 0
        %1124 = vmatprep.subr.bf16.mxu0 0
        %1125 = vmatpush1.bf16.xpose.msra.mxu0 %v1101
        %1126 = vmatprep.subr.bf16.mxu0 0
        %1127 = vmatpush1.bf16.xpose.msra.mxu0 %v1104
        %1128 = vmatprep.subr.bf16.mxu0 0
        %1129 = vmatpush1.bf16.xpose.msra.mxu0 %v1107
        %1130 = vmatprep.subr.bf16.mxu0 0
        %1131 = vmatpush1.bf16.xpose.msra.mxu0 %v1110
        %1132 = vmatprep.subr.bf16.mxu0 0
        %1133 = vmatpush1.bf16.xpose.msra.mxu0 %v1113
        %1134 = vmatprep.subr.bf16.mxu0 0
        %1135 = vmatpush1.bf16.xpose.msra.mxu0 %v1116
        %1136 = vmatprep.subr.bf16.mxu0 0
        %1137 = vmatpush1.bf16.xpose.msra.mxu0 %v1119
        %1138 = vmatprep.subr.bf16.mxu0 0
        %1139 = vmatpush1.bf16.xpose.msra.mxu0 %v1122
        %1140 = vmatprep.subr.bf16.mxu0 0
        %1141 = vmatpush1.bf16.xpose.msra.mxu0 0
        %1142 = vmatprep.subr.bf16.mxu0 0
        %1143 = vmatpush1.bf16.xpose.msra.mxu0 0
        %1144 = vmatprep.subr.bf16.mxu0 0
        %1145 = vmatpush1.bf16.xpose.msra.mxu0 0
        %1146 = vmatprep.subr.bf16.mxu0 0
        %1147 = vmatpush1.bf16.xpose.msra.mxu0 0
        %1148 = vmatprep.subr.bf16.mxu0 0
        %1149 = vmatpush1.bf16.xpose.msra.mxu0 0
        %1150 = vmatprep.subr.bf16.mxu0 0
        %1151 = vmatpush1.bf16.xpose.msra.mxu0 0
        %1152 = vmatprep.subr.bf16.mxu0 0
        %1153 = vmatpush1.bf16.xpose.msra.mxu0 0
        %1154 = vmatprep.subr.bf16.mxu0 0
        %1155 = vmatpush1.bf16.xpose.msra.mxu0 0
        %1156 = vmatprep.mubr.bf16.mxu0 0
        %1157 = vmatmul.mubr.bf16.gmra.mrb[0].mxu0 %v1098
        %v1158 = vpop.f32.mrb[0].mxu0
        %v1159 = vadd.f32 0.0, %v1158
        %v1160 = vpop.f32.mrb[0].mxu0
        %v1161 = vpop.f32.mrb[0].mxu0
        %v1162 = vpop.f32.mrb[0].mxu0
        %1163 = vdwg.mxu0
        %1165 = vrot.lane.b32.xlu0 %v953, 80
        %v1166 = vpop.permute.xlu0 %1165
        %vm1168 = vcmask 48128
        %1169 = vst.msk [vmem:[%s552] sm:$0xff] %vm1168, %v1166
        %1170 = vst [vmem:[%s529] sm:$0xff] %v1159
        %p1171 = scmp.lt.s32.totalorder %s30, 1
        %s1172 = scalar_select %p1171, %s30, 1
        %s1173 = smul.addr %s1172, 16
        %s1174 = smul.addr %s1173, 4
        %s1175 = scalar_lea.vmem %s13, %s1174
        %p1176 = scmp.lt.s32.totalorder %s30, 1
        %s1177 = scalar_select %p1176, %s30, 1
        %s1178 = smul.addr %s1177, 8
        %s1179 = scalar_lea.vmem %s14, %s1178
        %s1180 = sand.u32 %s378, 1
        %s1181 = scalar_lea.sflag [#allocation3], %s1180
        %s1182 = sand.u32 %s378, 1
        %s1183 = smul.addr %s1182, 8
        %s1184 = scalar_lea.vmem [#allocation2], %s1183
        // Predicated region
        $region73: #{tpu_custom_call.1} parent=71 // pred_check
          %p1185 = pneg %p336
        $region74: #{tpu_custom_call.1} parent=71 // pred_check_branch
          %1187 = sbr.rel (%p1185) target = $region76
        $region75: #{tpu_custom_call.1} parent=71 // pred_region
          _
        $region76: #{tpu_custom_call.1} parent=71 // pred_fallthru
          _
        // Predicated region
        $region77: #{tpu_custom_call.1} parent=71 // pred_check
          %p1188 = pneg %p362
        $region78: #{tpu_custom_call.1} parent=71 // pred_check_branch
          %1190 = sbr.rel (%p1188) target = $region80
        $region79: #{tpu_custom_call.1} parent=71 // pred_region
          _
        $region80: #{tpu_custom_call.1} parent=71 // pred_fallthru
          _
        // Predicated region
        $region81: #{tpu_custom_call.1} parent=71 // pred_check
          %p1191 = pneg %p388
        $region82: #{tpu_custom_call.1} parent=71 // pred_check_branch
          %1193 = sbr.rel (%p1191) target = $region84
        $region83: #{tpu_custom_call.1} parent=71 // pred_region
          %s1195 = ssub.s32 128, 128
          %1196 = vsyncadd %s1181, %s1195
          %s1197 = smul.addr %s30, 128
          %s1198 = scalar_lea.hbm %s15, %s1197
          %s1200 = sshll.u32 %s1184, 4
          %s1201 = int_to_ptr.vmem [resolvable:$true] %s1200
          %1203 = dma.vmem_to_hbm [thread:$0]  %s1201, 128, %s1198, %s1181
        $region84: #{tpu_custom_call.1} parent=71 // pred_fallthru
          _
      $region72: #{tpu_custom_call.1} parent=5 // pred_fallthru
        _
      %p1204 = scmp.le.s32.totalorder 2, %s25
      // Predicated region
      $region85: #{tpu_custom_call.1} parent=5 // pred_check
        %p1205 = pneg %p1204
      $region86: #{tpu_custom_call.1} parent=5 // pred_check_branch
        %1207 = sbr.rel (%p1205) target = $region88
      $region87: #{tpu_custom_call.1} parent=5 // pred_region
        %s1208 = ssub.s32 %s25, 2
        // Predicated region
        $region89: #{tpu_custom_call.1} parent=87 // pred_check
          %p1209 = pneg %p342
        $region90: #{tpu_custom_call.1} parent=87 // pred_check_branch
          %1211 = sbr.rel (%p1209) target = $region92
        $region91: #{tpu_custom_call.1} parent=87 // pred_region
          %p1212 = scmp.lt.s32.totalorder %s31, 1
          %s1213 = scalar_select %p1212, %s31, 1
          %s1214 = smul.addr %s1213, 16
          %s1215 = smul.addr %s1214, 4
          %s1216 = scalar_lea.vmem %s13, %s1215
        $region92: #{tpu_custom_call.1} parent=87 // pred_fallthru
          _
        // Predicated region
        $region93: #{tpu_custom_call.1} parent=87 // pred_check
          %p1217 = pneg %p368
        $region94: #{tpu_custom_call.1} parent=87 // pred_check_branch
          %1219 = sbr.rel (%p1217) target = $region96
        $region95: #{tpu_custom_call.1} parent=87 // pred_region
          %p1220 = scmp.lt.s32.totalorder %s31, 1
          %s1221 = scalar_select %p1220, %s31, 1
          %s1222 = smul.addr %s1221, 8
          %s1223 = scalar_lea.vmem %s14, %s1222
        $region96: #{tpu_custom_call.1} parent=87 // pred_fallthru
          _
        // Predicated region
        $region97: #{tpu_custom_call.1} parent=87 // pred_check
          %p1224 = pneg %p394
        $region98: #{tpu_custom_call.1} parent=87 // pred_check_branch
          %1226 = sbr.rel (%p1224) target = $region100
        $region99: #{tpu_custom_call.1} parent=87 // pred_region
          %s1227 = sand.u32 %s379, 1
          %s1228 = scalar_lea.sflag [#allocation3], %s1227
          %s1229 = sand.u32 %s379, 1
          %s1230 = smul.addr %s1229, 8
          %s1231 = scalar_lea.vmem [#allocation2], %s1230
          %1232 = dma.done %s1228, 128
        $region100: #{tpu_custom_call.1} parent=87 // pred_fallthru
          _
      $region88: #{tpu_custom_call.1} parent=5 // pred_fallthru
        _
    $region6: #{tpu_custom_call.1} parent=1 // loop_footer
      %s29 = sadd.s32 1, %s25
    $region7: #{tpu_custom_call.1} parent=1 // loop_footer_branch
      %24 = sbr.rel target = $region3
    $region8: #{tpu_custom_call.1} parent=1 // loop_exit
      _
    %1233 = vsyncpa [#allocation3], 1
    %s1234 = scalar_lea.sflag [#allocation3], 1
    %1235 = vsyncpa %s1234, 1

</llo_original>
